<compile_context>
chip_gen: v7x
topology: tpu7x:2x2x1
jax: 0.10.0
libtpu: 0.0.40
codegen_flags: <defaults>
</compile_context>

<pallas_src>
import jax
import jax.numpy as jnp
from jax.experimental import pallas as pl
from jax.experimental.pallas import tpu as pltpu

# Matmul operand dtype: bf16 operands, f32 MXU accumulation, f32 elementwise.
# NOTE (correctness review): with trained (non-tiny) weights you may want the
# last layer of each head in f32 -> set MATMUL_DTYPE = jnp.float32.
MATMUL_DTYPE = jnp.bfloat16

# ---------------------------------------------------------------------------
# Packed-buffer layouts (all in-kernel column slices start on 128-lane bounds).
# ---------------------------------------------------------------------------
# w32  (32, 512)  fan-in-32 (applied to x_cli):
#   [ algn∘SE0 composed (128) | classifier-L0 cli half (256) | CE0 pad (128) ]
W32_SE0C, W32_CL0B, W32_CE0 = 0, 128, 384
# w512 (512, 512) fan-in-512 (applied to x_img):
#   [ SE0 (128) | IE0 (128) | classifier-L0 img half (256) ]
W512_SE0, W512_IE0, W512_CL0A = 0, 128, 256
# w128 (128, 768) fan-in-128:
#   [ ID1 (256) | CD1 (256) | SE1 (64) | IE1 (64) | CE1 (64, rows 32: zero) | pad ]
W128_ID1, W128_CD1, W128_L1 = 0, 256, 512
W128_SE1, W128_IE1, W128_CE1 = 512, 576, 640
# wl2  (256, 128) encoder-L2 stack weight (block rows per branch):
#   rows [SE2 0:64 | IE2 64:128 | CE2 128:192 | 0], cols [se 0:32|ie 32:64|ce 64:96|0]
# w256 (256, 704) fan-in-256:
#   [ ID2 (512) | CD2 pad (128) | classifier-L1 (64) ]
W256_ID2, W256_CD2, W256_CL1 = 0, 512, 640
# w64  (64, 384)  fan-in-64:
#   [ ID0 (128) | CD0 (128) | classifier-L2 pad (128) ]
W64_D0, W64_CL2 = 0, 256
# bias slab (16, 640) f32: one fused lane-aligned bias row per matmul.
BR_CLI, BR_IMG, BR_L1, BR_CL1, BR_L2, BR_CL2, BR_D0, BR_D1, BR_D2 = range(9)
BIAS_ROWS, BIAS_COLS = 16, 640
# Packed lane-dense output slab columns.
OUT_IMGREC, OUT_CLIREC, OUT_CLS = 0, 512, 640          # widths 512, 128(32 used), 128(2 used)
OUT_COLS = 768


# ---------------------------------------------------------------------------
# Pallas kernel: whole DecoupleFusioner head fused into 9 stacked matmuls.
# ---------------------------------------------------------------------------
def fusioner_kernel(imgf_ref, clif_ref, w32_ref, w512_ref, w128_ref, wl2_ref,
                    w256_ref, w64_ref, bias_ref, out_ref):
    T = imgf_ref.shape[0]                       # batch-tile rows (multiple of 8)

    def mm(x, w):
        # bf16 (or f32) operands, f32 accumulation on the MXU.
        return jnp.dot(x.astype(w.dtype), w, preferred_element_type=jnp.float32)

    def bias(row, width):
        return bias_ref[row:row + 1, 0:width]   # (1, width) f32, broadcast add

    def relu(v):
        return jnp.maximum(v, 0.0)

    x_img = imgf_ref[...]                       # (T, 512) bf16
    x_cli = clif_ref[...]                       # (T, 32)  bf16

    # ---- L0: two independent fused matmuls (algn folded into shared L0) ----
    h_cli = mm(x_cli, w32_ref[...]) + bias(BR_CLI, 512)          # (T, 512)
    h_img = mm(x_img, w512_ref[...]) + bias(BR_IMG, 512)         # (T, 512)

    se0_img = relu(h_img[:, W512_SE0:W512_SE0 + 128])
    ie_h0   = relu(h_img[:, W512_IE0:W512_IE0 + 128])
    se0_cli = relu(h_cli[:, W32_SE0C:W32_SE0C + 128])
    ce_h0   = relu(h_cli[:, W32_CE0:W32_CE0 + 128])              # lanes 32: are 0
    cls_h0  = relu(h_img[:, W512_CL0A:W512_CL0A + 256]
                   + h_cli[:, W32_CL0B:W32_CL0B + 256])          # (T, 256)

    # ---- encoder L1: 4 branches row-stacked, one weight push ----
    enc_h0 = jnp.concatenate([se0_img, se0_cli, ie_h0, ce_h0], axis=0)   # (4T,128)
    enc_h1 = relu(mm(enc_h0, w128_ref[:, W128_L1:W128_L1 + 256])
                  + bias(BR_L1, 256))                                    # (4T,256)
    cls_h1 = relu(mm(cls_h0, w256_ref[:, W256_CL1:W256_CL1 + 64])
                  + bias(BR_CL1, 64))                                    # (T, 64)

    # ---- encoder L2: stacked (block-row weight, distinct out cols/branch) ----
    enc_out = mm(enc_h1, wl2_ref[...]) + bias(BR_L2, 128)                # (4T,128)
    img_related   = enc_out[0 * T:1 * T, 0:32]
    cli_related   = enc_out[1 * T:2 * T, 0:32]
    img_unrelated = enc_out[2 * T:3 * T, 32:64]
    cli_unrelated = enc_out[3 * T:4 * T, 64:96]
    cls_pad = mm(cls_h1, w64_ref[:, W64_CL2:W64_CL2 + 128]) + bias(BR_CL2, 128)

    # ---- decoders: img & cli decoders row-stacked through all 3 layers ----
    d0_in = jnp.concatenate(
        [jnp.concatenate([cli_related, img_unrelated], axis=1),
         jnp.concatenate([img_related, cli_unrelated], axis=1)], axis=0)  # (2T,64)
    d_h0 = relu(mm(d0_in, w64_ref[:, W64_D0:W64_D0 + 256]) + bias(BR_D0, 256))
    d_h1_in = jnp.concatenate([d_h0[0:T, 0:128], d_h0[T:2 * T, 128:256]], axis=0)
    d_h1 = relu(mm(d_h1_in, w128_ref[:, 0:512]) + bias(BR_D1, 512))       # (2T,512)
    d_h2_in = jnp.concatenate([d_h1[0:T, 0:256], d_h1[T:2 * T, 256:512]], axis=0)
    d_out = mm(d_h2_in, w256_ref[:, 0:640]) + bias(BR_D2, 640)            # (2T,640)

    # ---- packed lane-dense output (all stores 128-lane aligned) ----
    out_ref[:, OUT_IMGREC:OUT_IMGREC + 512] = d_out[0:T, 0:512]      # img_rec
    out_ref[:, OUT_CLIREC:OUT_CLIREC + 128] = d_out[T:2 * T, 512:640]  # cli_rec pad
    out_ref[:, OUT_CLS:OUT_CLS + 128] = cls_pad                      # classifier pad


# ---------------------------------------------------------------------------
# Parameter construction (deterministic; mimics _init_vit_weights:
# Linear weight ~ trunc_normal(std=0.01) ≈ N(0, 0.01^2), bias = 0).
# ---------------------------------------------------------------------------
def make_params(key):
    def linear(k, fan_in, fan_out):
        w = 0.01 * jax.random.normal(k, (fan_in, fan_out), jnp.float32)
        b = jnp.zeros((fan_out,), jnp.float32)
        return w, b

    keys = iter(jax.random.split(key, 19))
    p = {}
    p["algn"] = linear(next(keys), 32, 512)
    p["shared"] = [linear(next(keys), 512, 128), linear(next(keys), 128, 64),
                   linear(next(keys), 64, 32)]
    p["img_enc"] = [linear(next(keys), 512, 128), linear(next(keys), 128, 64),
                    linear(next(keys), 64, 32)]
    p["cli_enc"] = [linear(next(keys), 32, 32), linear(next(keys), 32, 64),
                    linear(next(keys), 64, 32)]
    p["classifier"] = [linear(next(keys), 544, 256), linear(next(keys), 256, 64),
                       linear(next(keys), 64, 2)]
    p["img_dec"] = [linear(next(keys), 64, 128), linear(next(keys), 128, 256),
                    linear(next(keys), 256, 512)]
    p["cli_dec"] = [linear(next(keys), 64, 128), linear(next(keys), 128, 256),
                    linear(next(keys), 256, 32)]
    return p


# ---------------------------------------------------------------------------
# Pack the 19 Linear layers into 7 DMA buffers (one-time; resident across calls).
# ---------------------------------------------------------------------------
def pack_params(params, matmul_dtype=MATMUL_DTYPE):
    algn_w, algn_b = params["algn"]
    (se_w0, se_b0), (se_w1, se_b1), (se_w2, se_b2) = params["shared"]
    (ie_w0, ie_b0), (ie_w1, ie_b1), (ie_w2, ie_b2) = params["img_enc"]
    (ce_w0, ce_b0), (ce_w1, ce_b1), (ce_w2, ce_b2) = params["cli_enc"]
    (cl_w0, cl_b0), (cl_w1, cl_b1), (cl_w2, cl_b2) = params["classifier"]
    (id_w0, id_b0), (id_w1, id_b1), (id_w2, id_b2) = params["img_dec"]
    (cd_w0, cd_b0), (cd_w1, cd_b1), (cd_w2, cd_b2) = params["cli_dec"]

    # algn -> shared-encoder-L0 has no activation in between: fold exactly.
    hp = jax.lax.Precision.HIGHEST
    sec_w0 = jnp.dot(algn_w, se_w0, precision=hp)                  # (32, 128)
    sec_b0 = jnp.dot(algn_b, se_w0, precision=hp) + se_b0          # (128,)

    cl_w0a, cl_w0b = cl_w0[:512], cl_w0[512:]                      # img / cli halves

    def pack(rows, cols, segs):
        buf = jnp.zeros((rows, cols), jnp.float32)
        for r, c, w in segs:
            buf = buf.at[r:r + w.shape[0], c:c + w.shape[1]].set(w)
        return buf.astype(matmul_dtype)

    w32 = pack(32, 512, [(0, W32_SE0C, sec_w0), (0, W32_CL0B, cl_w0b),
                         (0, W32_CE0, ce_w0)])
    w512 = pack(512, 512, [(0, W512_SE0, se_w0), (0, W512_IE0, ie_w0),
                           (0, W512_CL0A, cl_w0a)])
    w128 = pack(128, 768, [(0, W128_ID1, id_w1), (0, W128_CD1, cd_w1),
                           (0, W128_SE1, se_w1), (0, W128_IE1, ie_w1),
                           (0, W128_CE1, ce_w1)])
    wl2 = pack(256, 128, [(0, 0, se_w2), (64, 32, ie_w2), (128, 64, ce_w2)])
    w256 = pack(256, 704, [(0, W256_ID2, id_w2), (0, W256_CD2, cd_w2),
                           (0, W256_CL1, cl_w1)])
    w64 = pack(64, 384, [(0, W64_D0, id_w0), (0, W64_D0 + 128, cd_w0),
                         (0, W64_CL2, cl_w2)])

    bias = jnp.zeros((BIAS_ROWS, BIAS_COLS), jnp.float32)

    def put(b, row, col, v):
        return b.at[row, col:col + v.shape[0]].set(v)

    bias = put(bias, BR_CLI, W32_SE0C, sec_b0)
    bias = put(bias, BR_CLI, W32_CL0B, cl_b0)
    bias = put(bias, BR_CLI, W32_CE0, ce_b0)
    bias = put(bias, BR_IMG, W512_SE0, se_b0)
    bias = put(bias, BR_IMG, W512_IE0, ie_b0)
    bias = put(bias, BR_L1, 0, se_b1)
    bias = put(bias, BR_L1, 64, ie_b1)
    bias = put(bias, BR_L1, 128, ce_b1)
    bias = put(bias, BR_CL1, 0, cl_b1)
    bias = put(bias, BR_L2, 0, se_b2)
    bias = put(bias, BR_L2, 32, ie_b2)
    bias = put(bias, BR_L2, 64, ce_b2)
    bias = put(bias, BR_CL2, 0, cl_b2)
    bias = put(bias, BR_D0, 0, id_b0)
    bias = put(bias, BR_D0, 128, cd_b0)
    bias = put(bias, BR_D1, 0, id_b1)
    bias = put(bias, BR_D1, 256, cd_b1)
    bias = put(bias, BR_D2, 0, id_b2)
    bias = put(bias, BR_D2, 512, cd_b2)

    return dict(w32=w32, w512=w512, w128=w128, wl2=wl2, w256=w256, w64=w64,
                bias=bias)


# ---------------------------------------------------------------------------
# Wrapper: batch tiled over a "parallel" grid axis; weights resident (constant
# index_map); inputs pre-cast to bf16; pass-throughs returned directly.
# ---------------------------------------------------------------------------
def decouple_fusioner(img_feature, cli_feature, packed, *, block_rows=None):
    B = img_feature.shape[0]
    b_pad = -(-B // 8) * 8                      # sublane-aligned batch
    if block_rows is None:
        block_rows = b_pad if b_pad <= 128 else 128
    assert block_rows % 8 == 0
    b_pad = -(-b_pad // block_rows) * block_rows

    x_img = img_feature.astype(MATMUL_DTYPE)
    x_cli = cli_feature.astype(MATMUL_DTYPE)
    if b_pad != B:
        x_img = jnp.pad(x_img, ((0, b_pad - B), (0, 0)))
        x_cli = jnp.pad(x_cli, ((0, b_pad - B), (0, 0)))

    weights = [packed[k] for k in ("w32", "w512", "w128", "wl2", "w256", "w64",
                                   "bias")]
    in_specs = ([pl.BlockSpec((block_rows, 512), lambda i: (i, 0)),
                 pl.BlockSpec((block_rows, 32), lambda i: (i, 0))] +
                [pl.BlockSpec(w.shape, lambda i: (0, 0)) for w in weights])
    out_spec = pl.BlockSpec((block_rows, OUT_COLS), lambda i: (i, 0))

    packed_out = pl.pallas_call(
        fusioner_kernel,
        out_shape=jax.ShapeDtypeStruct((b_pad, OUT_COLS), jnp.float32),
        grid=(b_pad // block_rows,),
        in_specs=in_specs,
        out_specs=out_spec,
        compiler_params=pltpu.CompilerParams(
            dimension_semantics=("parallel",),   # v7x: both TCs split the tiles
            vmem_limit_bytes=16 << 20,           # footprint ~3 MiB at Btile=128
        ),
    )(x_img, x_cli, *weights)

    out = packed_out[:B, OUT_CLS:OUT_CLS + 2]
    img_rec = packed_out[:B, OUT_IMGREC:OUT_IMGREC + 512]
    cli_rec = packed_out[:B, OUT_CLIREC:OUT_CLIREC + 32]
    # Pass-throughs returned directly (no kernel DMA needed).
    return out, img_rec, cli_rec, img_feature, cli_feature


# ---------------------------------------------------------------------------
# Pure-JAX f32 reference for correctness checking.
# ---------------------------------------------------------------------------
def reference(img_feature, cli_feature, params):
    def mlp3(x, layers):
        for i, (w, b) in enumerate(layers):
            x = x @ w + b
            if i < len(layers) - 1:
                x = jnp.maximum(x, 0.0)
        return x

    algn_w, algn_b = params["algn"]
    cli_algned = cli_feature @ algn_w + algn_b
    img_related = mlp3(img_feature, params["shared"])
    cli_related = mlp3(cli_algned, params["shared"])
    img_unrelated = mlp3(img_feature, params["img_enc"])
    cli_unrelated = mlp3(cli_feature, params["cli_enc"])
    out = mlp3(jnp.concatenate([img_feature, cli_feature], axis=1),
               params["classifier"])
    img_rec = mlp3(jnp.concatenate([cli_related, img_unrelated], axis=1),
                   params["img_dec"])
    cli_rec = mlp3(jnp.concatenate([img_related, cli_unrelated], axis=1),
                   params["cli_dec"])
    return out, img_rec, cli_rec, img_feature, cli_feature


def _check(outs, refs):
    for o, r in zip(outs, refs):
        assert o.shape == r.shape and o.dtype == r.dtype
        scale = float(jnp.max(jnp.abs(r))) + 1e-6
        err = float(jnp.max(jnp.abs(o - r)))
        # bf16 matmul operands (f32 accumulate): allow small abs + 3% of scale.
        assert err <= 1e-3 + 3e-2 * scale, f"mismatch vs reference: {err} (scale {scale})"


if __name__ == "__main__":
    key = jax.random.PRNGKey(0)
    k_param, k_img, k_cli, k_img2, k_cli2 = jax.random.split(key, 5)

    params = make_params(k_param)
    packed = pack_params(params)      # one-time packing; resident across calls

    # Case 1: B=8, single grid step.
    B = 8
    img_feature = jax.random.normal(k_img, (B, 512), jnp.float32)
    cli_feature = jax.random.normal(k_cli, (B, 32), jnp.float32)
    outs = jax.block_until_ready(decouple_fusioner(img_feature, cli_feature, packed))
    _check(outs, reference(img_feature, cli_feature, params))

    # Case 2: B=16 tiled as two grid steps (weights stay resident across tiles).
    B2 = 16
    img_feature2 = jax.random.normal(k_img2, (B2, 512), jnp.float32)
    cli_feature2 = jax.random.normal(k_cli2, (B2, 32), jnp.float32)
    outs2 = jax.block_until_ready(
        decouple_fusioner(img_feature2, cli_feature2, packed, block_rows=8))
    _check(outs2, reference(img_feature2, cli_feature2, params))

    print("KERNEL_OK")
</pallas_src>

<mosaic_0001>
module attributes {stable_mosaic.version = 11 : i64} {
  func.func @fusioner_kernel(%arg0: i32, %arg1: memref<8x512xbf16, #tpu.memory_space<vmem>>, %arg2: memref<8x32xbf16, #tpu.memory_space<vmem>>, %arg3: memref<32x512xbf16, #tpu.memory_space<vmem>>, %arg4: memref<512x512xbf16, #tpu.memory_space<vmem>>, %arg5: memref<128x768xbf16, #tpu.memory_space<vmem>>, %arg6: memref<256x128xbf16, #tpu.memory_space<vmem>>, %arg7: memref<256x704xbf16, #tpu.memory_space<vmem>>, %arg8: memref<64x384xbf16, #tpu.memory_space<vmem>>, %arg9: memref<16x640xf32, #tpu.memory_space<vmem>>, %arg10: memref<8x768xf32, #tpu.memory_space<vmem>>) attributes {dimension_semantics = [#tpu.dimension_semantics<parallel>], iteration_bounds = array<i64: 1>, scalar_prefetch = 0 : i64, scratch_operands = 0 : i64, tpu.core_type = #tpu.core_type<tc>, window_params = [{transform_indices = @transform_0, window_bounds = array<i64: 8, 512>}, {transform_indices = @transform_1, window_bounds = array<i64: 8, 32>}, {pipeline_mode = #tpu.pipeline_mode<synchronous>, transform_indices = @transform_2, window_bounds = array<i64: 32, 512>}, {pipeline_mode = #tpu.pipeline_mode<synchronous>, transform_indices = @transform_3, window_bounds = array<i64: 512, 512>}, {pipeline_mode = #tpu.pipeline_mode<synchronous>, transform_indices = @transform_4, window_bounds = array<i64: 128, 768>}, {pipeline_mode = #tpu.pipeline_mode<synchronous>, transform_indices = @transform_5, window_bounds = array<i64: 256, 128>}, {pipeline_mode = #tpu.pipeline_mode<synchronous>, transform_indices = @transform_6, window_bounds = array<i64: 256, 704>}, {pipeline_mode = #tpu.pipeline_mode<synchronous>, transform_indices = @transform_7, window_bounds = array<i64: 64, 384>}, {pipeline_mode = #tpu.pipeline_mode<synchronous>, transform_indices = @transform_8, window_bounds = array<i64: 16, 640>}, {transform_indices = @transform_9, window_bounds = array<i64: 8, 768>}]} {
    %c0 = arith.constant 0 : index
    %c0_0 = arith.constant 0 : index
    %0 = vector.load %arg1[%c0, %c0_0] : memref<8x512xbf16, #tpu.memory_space<vmem>>, vector<8x512xbf16>
    %c0_1 = arith.constant 0 : index
    %c0_2 = arith.constant 0 : index
    %1 = vector.load %arg2[%c0_1, %c0_2] : memref<8x32xbf16, #tpu.memory_space<vmem>>, vector<8x32xbf16>
    %c0_3 = arith.constant 0 : index
    %c0_4 = arith.constant 0 : index
    %2 = vector.load %arg3[%c0_3, %c0_4] : memref<32x512xbf16, #tpu.memory_space<vmem>>, vector<32x512xbf16>
    %cst = arith.constant dense<0.000000e+00> : vector<8x512xf32>
    %3 = tpu.matmul %1, %2, %cst {dimension_numbers = #tpu.dot_dimension_numbers<[1], [0], [0], [1], [0, 0, 1, 1], [], []>} : vector<8x32xbf16>, vector<32x512xbf16>, vector<8x512xf32> -> vector<8x512xf32>
    %c0_5 = arith.constant 0 : index
    %c0_6 = arith.constant 0 : index
    %4 = vector.load %arg9[%c0_5, %c0_6] : memref<16x640xf32, #tpu.memory_space<vmem>>, vector<1x512xf32>
    %5 = vector.broadcast %4 : vector<1x512xf32> to vector<8x512xf32>
    %6 = arith.addf %3, %5 : vector<8x512xf32>
    %c0_7 = arith.constant 0 : index
    %c0_8 = arith.constant 0 : index
    %7 = vector.load %arg4[%c0_7, %c0_8] : memref<512x512xbf16, #tpu.memory_space<vmem>>, vector<512x512xbf16>
    %cst_9 = arith.constant dense<0.000000e+00> : vector<8x512xf32>
    %8 = tpu.matmul %0, %7, %cst_9 {dimension_numbers = #tpu.dot_dimension_numbers<[1], [0], [0], [1], [0, 0, 1, 1], [], []>} : vector<8x512xbf16>, vector<512x512xbf16>, vector<8x512xf32> -> vector<8x512xf32>
    %c1 = arith.constant 1 : index
    %c0_10 = arith.constant 0 : index
    %9 = vector.load %arg9[%c1, %c0_10] : memref<16x640xf32, #tpu.memory_space<vmem>>, vector<1x512xf32>
    %10 = vector.broadcast %9 : vector<1x512xf32> to vector<8x512xf32>
    %11 = arith.addf %8, %10 : vector<8x512xf32>
    %12 = vector.extract_strided_slice %11 {offsets = [0, 0], sizes = [8, 128], strides = [1, 1]} : vector<8x512xf32> to vector<8x128xf32>
    %cst_11 = arith.constant 0.000000e+00 : f32
    %13 = vector.broadcast %cst_11 : f32 to vector<8x128xf32>
    %14 = arith.maximumf %12, %13 : vector<8x128xf32>
    %15 = vector.extract_strided_slice %11 {offsets = [0, 128], sizes = [8, 128], strides = [1, 1]} : vector<8x512xf32> to vector<8x128xf32>
    %cst_12 = arith.constant 0.000000e+00 : f32
    %16 = vector.broadcast %cst_12 : f32 to vector<8x128xf32>
    %17 = arith.maximumf %15, %16 : vector<8x128xf32>
    %18 = vector.extract_strided_slice %6 {offsets = [0, 0], sizes = [8, 128], strides = [1, 1]} : vector<8x512xf32> to vector<8x128xf32>
    %cst_13 = arith.constant 0.000000e+00 : f32
    %19 = vector.broadcast %cst_13 : f32 to vector<8x128xf32>
    %20 = arith.maximumf %18, %19 : vector<8x128xf32>
    %21 = vector.extract_strided_slice %6 {offsets = [0, 384], sizes = [8, 128], strides = [1, 1]} : vector<8x512xf32> to vector<8x128xf32>
    %cst_14 = arith.constant 0.000000e+00 : f32
    %22 = vector.broadcast %cst_14 : f32 to vector<8x128xf32>
    %23 = arith.maximumf %21, %22 : vector<8x128xf32>
    %24 = vector.extract_strided_slice %11 {offsets = [0, 256], sizes = [8, 256], strides = [1, 1]} : vector<8x512xf32> to vector<8x256xf32>
    %25 = vector.extract_strided_slice %6 {offsets = [0, 128], sizes = [8, 256], strides = [1, 1]} : vector<8x512xf32> to vector<8x256xf32>
    %26 = arith.addf %24, %25 : vector<8x256xf32>
    %cst_15 = arith.constant 0.000000e+00 : f32
    %27 = vector.broadcast %cst_15 : f32 to vector<8x256xf32>
    %28 = arith.maximumf %26, %27 : vector<8x256xf32>
    %29 = tpu.concatenate %14, %20, %17, %23 in 0 : vector<8x128xf32>, vector<8x128xf32>, vector<8x128xf32>, vector<8x128xf32> -> vector<32x128xf32>
    %c0_16 = arith.constant 0 : index
    %c512 = arith.constant 512 : index
    %30 = vector.load %arg5[%c0_16, %c512] : memref<128x768xbf16, #tpu.memory_space<vmem>>, vector<128x256xbf16>
    %31 = arith.truncf %29 : vector<32x128xf32> to vector<32x128xbf16>
    %cst_17 = arith.constant dense<0.000000e+00> : vector<32x256xf32>
    %32 = tpu.matmul %31, %30, %cst_17 {dimension_numbers = #tpu.dot_dimension_numbers<[1], [0], [0], [1], [0, 0, 1, 1], [], []>} : vector<32x128xbf16>, vector<128x256xbf16>, vector<32x256xf32> -> vector<32x256xf32>
    %c2 = arith.constant 2 : index
    %c0_18 = arith.constant 0 : index
    %33 = vector.load %arg9[%c2, %c0_18] : memref<16x640xf32, #tpu.memory_space<vmem>>, vector<1x256xf32>
    %34 = vector.broadcast %33 : vector<1x256xf32> to vector<32x256xf32>
    %35 = arith.addf %32, %34 : vector<32x256xf32>
    %cst_19 = arith.constant 0.000000e+00 : f32
    %36 = vector.broadcast %cst_19 : f32 to vector<32x256xf32>
    %37 = arith.maximumf %35, %36 : vector<32x256xf32>
    %c0_20 = arith.constant 0 : index
    %c640 = arith.constant 640 : index
    %38 = vector.load %arg7[%c0_20, %c640] : memref<256x704xbf16, #tpu.memory_space<vmem>>, vector<256x64xbf16>
    %39 = arith.truncf %28 : vector<8x256xf32> to vector<8x256xbf16>
    %cst_21 = arith.constant dense<0.000000e+00> : vector<8x64xf32>
    %40 = tpu.matmul %39, %38, %cst_21 {dimension_numbers = #tpu.dot_dimension_numbers<[1], [0], [0], [1], [0, 0, 1, 1], [], []>} : vector<8x256xbf16>, vector<256x64xbf16>, vector<8x64xf32> -> vector<8x64xf32>
    %c3 = arith.constant 3 : index
    %c0_22 = arith.constant 0 : index
    %41 = vector.load %arg9[%c3, %c0_22] : memref<16x640xf32, #tpu.memory_space<vmem>>, vector<1x64xf32>
    %42 = vector.broadcast %41 : vector<1x64xf32> to vector<8x64xf32>
    %43 = arith.addf %40, %42 : vector<8x64xf32>
    %cst_23 = arith.constant 0.000000e+00 : f32
    %44 = vector.broadcast %cst_23 : f32 to vector<8x64xf32>
    %45 = arith.maximumf %43, %44 : vector<8x64xf32>
    %c0_24 = arith.constant 0 : index
    %c0_25 = arith.constant 0 : index
    %46 = vector.load %arg6[%c0_24, %c0_25] : memref<256x128xbf16, #tpu.memory_space<vmem>>, vector<256x128xbf16>
    %47 = arith.truncf %37 : vector<32x256xf32> to vector<32x256xbf16>
    %cst_26 = arith.constant dense<0.000000e+00> : vector<32x128xf32>
    %48 = tpu.matmul %47, %46, %cst_26 {dimension_numbers = #tpu.dot_dimension_numbers<[1], [0], [0], [1], [0, 0, 1, 1], [], []>} : vector<32x256xbf16>, vector<256x128xbf16>, vector<32x128xf32> -> vector<32x128xf32>
    %c4 = arith.constant 4 : index
    %c0_27 = arith.constant 0 : index
    %49 = vector.load %arg9[%c4, %c0_27] : memref<16x640xf32, #tpu.memory_space<vmem>>, vector<1x128xf32>
    %50 = vector.broadcast %49 : vector<1x128xf32> to vector<32x128xf32>
    %51 = arith.addf %48, %50 : vector<32x128xf32>
    %52 = vector.extract_strided_slice %51 {offsets = [0, 0], sizes = [8, 32], strides = [1, 1]} : vector<32x128xf32> to vector<8x32xf32>
    %53 = vector.extract_strided_slice %51 {offsets = [8, 0], sizes = [8, 32], strides = [1, 1]} : vector<32x128xf32> to vector<8x32xf32>
    %54 = vector.extract_strided_slice %51 {offsets = [16, 32], sizes = [8, 32], strides = [1, 1]} : vector<32x128xf32> to vector<8x32xf32>
    %55 = vector.extract_strided_slice %51 {offsets = [24, 64], sizes = [8, 32], strides = [1, 1]} : vector<32x128xf32> to vector<8x32xf32>
    %c0_28 = arith.constant 0 : index
    %c256 = arith.constant 256 : index
    %56 = vector.load %arg8[%c0_28, %c256] : memref<64x384xbf16, #tpu.memory_space<vmem>>, vector<64x128xbf16>
    %57 = arith.truncf %45 : vector<8x64xf32> to vector<8x64xbf16>
    %cst_29 = arith.constant dense<0.000000e+00> : vector<8x128xf32>
    %58 = tpu.matmul %57, %56, %cst_29 {dimension_numbers = #tpu.dot_dimension_numbers<[1], [0], [0], [1], [0, 0, 1, 1], [], []>} : vector<8x64xbf16>, vector<64x128xbf16>, vector<8x128xf32> -> vector<8x128xf32>
    %c5 = arith.constant 5 : index
    %c0_30 = arith.constant 0 : index
    %59 = vector.load %arg9[%c5, %c0_30] : memref<16x640xf32, #tpu.memory_space<vmem>>, vector<1x128xf32>
    %60 = vector.broadcast %59 : vector<1x128xf32> to vector<8x128xf32>
    %61 = arith.addf %58, %60 : vector<8x128xf32>
    %62 = tpu.concatenate %53, %54 in 1 : vector<8x32xf32>, vector<8x32xf32> -> vector<8x64xf32>
    %63 = tpu.concatenate %52, %55 in 1 : vector<8x32xf32>, vector<8x32xf32> -> vector<8x64xf32>
    %64 = tpu.concatenate %62, %63 in 0 : vector<8x64xf32>, vector<8x64xf32> -> vector<16x64xf32>
    %c0_31 = arith.constant 0 : index
    %c0_32 = arith.constant 0 : index
    %65 = vector.load %arg8[%c0_31, %c0_32] : memref<64x384xbf16, #tpu.memory_space<vmem>>, vector<64x256xbf16>
    %66 = arith.truncf %64 : vector<16x64xf32> to vector<16x64xbf16>
    %cst_33 = arith.constant dense<0.000000e+00> : vector<16x256xf32>
    %67 = tpu.matmul %66, %65, %cst_33 {dimension_numbers = #tpu.dot_dimension_numbers<[1], [0], [0], [1], [0, 0, 1, 1], [], []>} : vector<16x64xbf16>, vector<64x256xbf16>, vector<16x256xf32> -> vector<16x256xf32>
    %c6 = arith.constant 6 : index
    %c0_34 = arith.constant 0 : index
    %68 = vector.load %arg9[%c6, %c0_34] : memref<16x640xf32, #tpu.memory_space<vmem>>, vector<1x256xf32>
    %69 = vector.broadcast %68 : vector<1x256xf32> to vector<16x256xf32>
    %70 = arith.addf %67, %69 : vector<16x256xf32>
    %cst_35 = arith.constant 0.000000e+00 : f32
    %71 = vector.broadcast %cst_35 : f32 to vector<16x256xf32>
    %72 = arith.maximumf %70, %71 : vector<16x256xf32>
    %73 = vector.extract_strided_slice %72 {offsets = [0, 0], sizes = [8, 128], strides = [1, 1]} : vector<16x256xf32> to vector<8x128xf32>
    %74 = vector.extract_strided_slice %72 {offsets = [8, 128], sizes = [8, 128], strides = [1, 1]} : vector<16x256xf32> to vector<8x128xf32>
    %75 = tpu.concatenate %73, %74 in 0 : vector<8x128xf32>, vector<8x128xf32> -> vector<16x128xf32>
    %c0_36 = arith.constant 0 : index
    %c0_37 = arith.constant 0 : index
    %76 = vector.load %arg5[%c0_36, %c0_37] : memref<128x768xbf16, #tpu.memory_space<vmem>>, vector<128x512xbf16>
    %77 = arith.truncf %75 : vector<16x128xf32> to vector<16x128xbf16>
    %cst_38 = arith.constant dense<0.000000e+00> : vector<16x512xf32>
    %78 = tpu.matmul %77, %76, %cst_38 {dimension_numbers = #tpu.dot_dimension_numbers<[1], [0], [0], [1], [0, 0, 1, 1], [], []>} : vector<16x128xbf16>, vector<128x512xbf16>, vector<16x512xf32> -> vector<16x512xf32>
    %c7 = arith.constant 7 : index
    %c0_39 = arith.constant 0 : index
    %79 = vector.load %arg9[%c7, %c0_39] : memref<16x640xf32, #tpu.memory_space<vmem>>, vector<1x512xf32>
    %80 = vector.broadcast %79 : vector<1x512xf32> to vector<16x512xf32>
    %81 = arith.addf %78, %80 : vector<16x512xf32>
    %cst_40 = arith.constant 0.000000e+00 : f32
    %82 = vector.broadcast %cst_40 : f32 to vector<16x512xf32>
    %83 = arith.maximumf %81, %82 : vector<16x512xf32>
    %84 = vector.extract_strided_slice %83 {offsets = [0, 0], sizes = [8, 256], strides = [1, 1]} : vector<16x512xf32> to vector<8x256xf32>
    %85 = vector.extract_strided_slice %83 {offsets = [8, 256], sizes = [8, 256], strides = [1, 1]} : vector<16x512xf32> to vector<8x256xf32>
    %86 = tpu.concatenate %84, %85 in 0 : vector<8x256xf32>, vector<8x256xf32> -> vector<16x256xf32>
    %c0_41 = arith.constant 0 : index
    %c0_42 = arith.constant 0 : index
    %87 = vector.load %arg7[%c0_41, %c0_42] : memref<256x704xbf16, #tpu.memory_space<vmem>>, vector<256x640xbf16>
    %88 = arith.truncf %86 : vector<16x256xf32> to vector<16x256xbf16>
    %cst_43 = arith.constant dense<0.000000e+00> : vector<16x640xf32>
    %89 = tpu.matmul %88, %87, %cst_43 {dimension_numbers = #tpu.dot_dimension_numbers<[1], [0], [0], [1], [0, 0, 1, 1], [], []>} : vector<16x256xbf16>, vector<256x640xbf16>, vector<16x640xf32> -> vector<16x640xf32>
    %c8 = arith.constant 8 : index
    %c0_44 = arith.constant 0 : index
    %90 = vector.load %arg9[%c8, %c0_44] : memref<16x640xf32, #tpu.memory_space<vmem>>, vector<1x640xf32>
    %91 = vector.broadcast %90 : vector<1x640xf32> to vector<16x640xf32>
    %92 = arith.addf %89, %91 : vector<16x640xf32>
    %93 = vector.extract_strided_slice %92 {offsets = [0, 0], sizes = [8, 512], strides = [1, 1]} : vector<16x640xf32> to vector<8x512xf32>
    %c0_45 = arith.constant 0 : index
    %c0_46 = arith.constant 0 : index
    %94 = vector.load %arg10[%c0_45, %c0_46] : memref<8x768xf32, #tpu.memory_space<vmem>>, vector<8x512xf32>
    tpu.vector_store %arg10[%c0_45, %c0_46], %93 {strides = array<i32>} : memref<8x768xf32, #tpu.memory_space<vmem>>, vector<8x512xf32>,
    %95 = vector.extract_strided_slice %92 {offsets = [8, 512], sizes = [8, 128], strides = [1, 1]} : vector<16x640xf32> to vector<8x128xf32>
    %c0_47 = arith.constant 0 : index
    %c512_48 = arith.constant 512 : index
    %96 = vector.load %arg10[%c0_47, %c512_48] : memref<8x768xf32, #tpu.memory_space<vmem>>, vector<8x128xf32>
    tpu.vector_store %arg10[%c0_47, %c512_48], %95 {strides = array<i32>} : memref<8x768xf32, #tpu.memory_space<vmem>>, vector<8x128xf32>,
    %c0_49 = arith.constant 0 : index
    %c640_50 = arith.constant 640 : index
    %97 = vector.load %arg10[%c0_49, %c640_50] : memref<8x768xf32, #tpu.memory_space<vmem>>, vector<8x128xf32>
    tpu.vector_store %arg10[%c0_49, %c640_50], %61 {strides = array<i32>} : memref<8x768xf32, #tpu.memory_space<vmem>>, vector<8x128xf32>,
    return
  }
  func.func @transform_0(%arg0: i32) -> (i32, i32) {
    %c0_i32 = arith.constant 0 : i32
    %c0_i32_0 = arith.constant 0 : i32
    return %arg0, %c0_i32 : i32, i32
  }
  func.func @transform_1(%arg0: i32) -> (i32, i32) {
    %c0_i32 = arith.constant 0 : i32
    %c0_i32_0 = arith.constant 0 : i32
    return %arg0, %c0_i32 : i32, i32
  }
  func.func @transform_2(%arg0: i32) -> (i32, i32) {
    %c0_i32 = arith.constant 0 : i32
    %c0_i32_0 = arith.constant 0 : i32
    %c0_i32_1 = arith.constant 0 : i32
    return %c0_i32, %c0_i32_0 : i32, i32
  }
  func.func @transform_3(%arg0: i32) -> (i32, i32) {
    %c0_i32 = arith.constant 0 : i32
    %c0_i32_0 = arith.constant 0 : i32
    %c0_i32_1 = arith.constant 0 : i32
    return %c0_i32, %c0_i32_0 : i32, i32
  }
  func.func @transform_4(%arg0: i32) -> (i32, i32) {
    %c0_i32 = arith.constant 0 : i32
    %c0_i32_0 = arith.constant 0 : i32
    %c0_i32_1 = arith.constant 0 : i32
    return %c0_i32, %c0_i32_0 : i32, i32
  }
  func.func @transform_5(%arg0: i32) -> (i32, i32) {
    %c0_i32 = arith.constant 0 : i32
    %c0_i32_0 = arith.constant 0 : i32
    %c0_i32_1 = arith.constant 0 : i32
    return %c0_i32, %c0_i32_0 : i32, i32
  }
  func.func @transform_6(%arg0: i32) -> (i32, i32) {
    %c0_i32 = arith.constant 0 : i32
    %c0_i32_0 = arith.constant 0 : i32
    %c0_i32_1 = arith.constant 0 : i32
    return %c0_i32, %c0_i32_0 : i32, i32
  }
  func.func @transform_7(%arg0: i32) -> (i32, i32) {
    %c0_i32 = arith.constant 0 : i32
    %c0_i32_0 = arith.constant 0 : i32
    %c0_i32_1 = arith.constant 0 : i32
    return %c0_i32, %c0_i32_0 : i32, i32
  }
  func.func @transform_8(%arg0: i32) -> (i32, i32) {
    %c0_i32 = arith.constant 0 : i32
    %c0_i32_0 = arith.constant 0 : i32
    %c0_i32_1 = arith.constant 0 : i32
    return %c0_i32, %c0_i32_0 : i32, i32
  }
  func.func @transform_9(%arg0: i32) -> (i32, i32) {
    %c0_i32 = arith.constant 0 : i32
    %c0_i32_0 = arith.constant 0 : i32
    return %arg0, %c0_i32 : i32, i32
  }
}

</mosaic_0001>

<llo_original>
// kernel: tpu_custom_call.1
$region0: #{tpu_custom_call.1}
  #allocation0 [shape = 'u32[]', space=smem, size = 0x4, offset = 0x4, fixed_abs, tag = 'smem constant byte address 0x4 - core index']
  #allocation1 [shape = 'u32[144,128]{1,0:T(1,128)}', space=vmem, size = 0x12000, scoped, tag = 'internal scratch']
  %s0 = inlined_call_operand.hbm [shape: bf16[8,512], index: 0, kind: input, shape index: {}]
  %s1 = inlined_call_operand.vmem [shape: bf16[8,32], index: 1, kind: input, shape index: {}]
  %s2 = inlined_call_operand.hbm [shape: bf16[32,512], index: 2, kind: input, shape index: {}]
  %s3 = inlined_call_operand.vmem [shape: bf16[512,512], index: 3, kind: input, shape index: {}]
  %s4 = inlined_call_operand.vmem [shape: bf16[128,768], index: 4, kind: input, shape index: {}]
  %s5 = inlined_call_operand.hbm [shape: bf16[256,128], index: 5, kind: input, shape index: {}]
  %s6 = inlined_call_operand.vmem [shape: bf16[256,704], index: 6, kind: input, shape index: {}]
  %s7 = inlined_call_operand.hbm [shape: bf16[64,384], index: 7, kind: input, shape index: {}]
  %s8 = inlined_call_operand.vmem [shape: f32[16,640], index: 8, kind: input, shape index: {}]
  %s9 = inlined_call_operand.hbm [shape: f32[8,768], index: 9, kind: output, shape index: {}]
  %s10 = sld [smem:[#allocation0]]
  $region62: #{tpu_custom_call.1} parent=0
    _
  %s12 = ssub.s32 1, %s10
  %s13 = scalar_select 0, %s12, %s10
  $region1: #{tpu_custom_call.1} parent=0
    #allocation2 [shape = 'u8[8192]{0}', space=vmem, size = 0x2000, scoped, tag = 'input window, operand 0, single buffered']
    #allocation3 [shape = 's32[1]{0}', space=sflag, size = 0x4, scoped, tag = 'scoped memory for tpu_custom_call.1']
    #allocation4 [shape = 's32[1]{0}', space=sflag, size = 0x4, scoped, tag = 'scoped memory for tpu_custom_call.1']
    #allocation5 [shape = 'u8[32768]{0}', space=vmem, size = 0x8000, scoped, tag = 'input window, operand 2, single buffered']
    #allocation6 [shape = 's32[1]{0}', space=sflag, size = 0x4, scoped, tag = 'scoped memory for tpu_custom_call.1']
    #allocation7 [shape = 'u8[65536]{0}', space=vmem, size = 0x10000, scoped, tag = 'input window, operand 5, single buffered']
    #allocation8 [shape = 'u8[49152]{0}', space=vmem, size = 0xc000, scoped, tag = 'input window, operand 7, single buffered']
    #allocation9 [shape = 's32[1]{0}', space=sflag, size = 0x4, scoped, tag = 'scoped memory for tpu_custom_call.1']
    #allocation10 [shape = 'u8[24576]{0}', space=vmem, size = 0x6000, scoped, tag = 'output window, operand 0, single buffered']
    %14 = vsyncpa [#allocation3], 0
    %15 = vsyncpa [#allocation6], 0
    %16 = vsyncpa [#allocation9], 0
    %17 = vsyncpa [#allocation4], 0
    // Predicated region
    $region2: #{tpu_custom_call.1} parent=1 // pred_check
      _
    $region3: #{tpu_custom_call.1} parent=1 // pred_check_branch
      %19 = sbr.rel (0) target = $region5
    $region4: #{tpu_custom_call.1} parent=1 // pred_region
      %s21 = ssub.s32 256, 256
      %22 = vsyncadd [#allocation3], %s21
      %s24 = sshll.u32 [#allocation2], 4
      %s25 = int_to_ptr.vmem [resolvable:$true] %s24
      %27 = dma.hbm_to_vmem [thread:$0]  %s0, 256, %s25, [#allocation3]
    $region5: #{tpu_custom_call.1} parent=1 // pred_fallthru
      _
    // Predicated region
    $region6: #{tpu_custom_call.1} parent=1 // pred_check
      _
    $region7: #{tpu_custom_call.1} parent=1 // pred_check_branch
      %29 = sbr.rel (0) target = $region9
    $region8: #{tpu_custom_call.1} parent=1 // pred_region
      _
    $region9: #{tpu_custom_call.1} parent=1 // pred_fallthru
      _
    // Predicated region
    $region10: #{tpu_custom_call.1} parent=1 // pred_check
      _
    $region11: #{tpu_custom_call.1} parent=1 // pred_check_branch
      %31 = sbr.rel (0) target = $region13
    $region12: #{tpu_custom_call.1} parent=1 // pred_region
      %s33 = ssub.s32 1024, 1024
      %34 = vsyncadd [#allocation6], %s33
      %s35 = sshll.u32 [#allocation5], 4
      %s36 = int_to_ptr.vmem [resolvable:$true] %s35
      %41 = dma.hbm_to_vmem [thread:$0]  %s2, 1024, %s36, [#allocation6], 256, 256, 16
    $region13: #{tpu_custom_call.1} parent=1 // pred_fallthru
      _
    // Predicated region
    $region14: #{tpu_custom_call.1} parent=1 // pred_check
      _
    $region15: #{tpu_custom_call.1} parent=1 // pred_check_branch
      %43 = sbr.rel (0) target = $region17
    $region16: #{tpu_custom_call.1} parent=1 // pred_region
      _
    $region17: #{tpu_custom_call.1} parent=1 // pred_fallthru
      _
    // Predicated region
    $region18: #{tpu_custom_call.1} parent=1 // pred_check
      _
    $region19: #{tpu_custom_call.1} parent=1 // pred_check_branch
      %45 = sbr.rel (0) target = $region21
    $region20: #{tpu_custom_call.1} parent=1 // pred_region
      _
    $region21: #{tpu_custom_call.1} parent=1 // pred_fallthru
      _
    // Predicated region
    $region22: #{tpu_custom_call.1} parent=1 // pred_check
      _
    $region23: #{tpu_custom_call.1} parent=1 // pred_check_branch
      %47 = sbr.rel (0) target = $region25
    $region24: #{tpu_custom_call.1} parent=1 // pred_region
      %s49 = ssub.s32 2048, 2048
      %50 = vsyncadd [#allocation6], %s49
      %s51 = sshll.u32 [#allocation7], 4
      %s52 = int_to_ptr.vmem [resolvable:$true] %s51
      %57 = dma.hbm_to_vmem [thread:$0]  %s5, 2048, %s52, [#allocation6], 64, 64, 4
    $region25: #{tpu_custom_call.1} parent=1 // pred_fallthru
      _
    // Predicated region
    $region26: #{tpu_custom_call.1} parent=1 // pred_check
      _
    $region27: #{tpu_custom_call.1} parent=1 // pred_check_branch
      %59 = sbr.rel (0) target = $region29
    $region28: #{tpu_custom_call.1} parent=1 // pred_region
      _
    $region29: #{tpu_custom_call.1} parent=1 // pred_fallthru
      _
    // Predicated region
    $region30: #{tpu_custom_call.1} parent=1 // pred_check
      _
    $region31: #{tpu_custom_call.1} parent=1 // pred_check_branch
      %61 = sbr.rel (0) target = $region33
    $region32: #{tpu_custom_call.1} parent=1 // pred_region
      %s63 = ssub.s32 1536, 1536
      %64 = vsyncadd [#allocation9], %s63
      %s65 = sshll.u32 [#allocation8], 4
      %s66 = int_to_ptr.vmem [resolvable:$true] %s65
      %71 = dma.hbm_to_vmem [thread:$0]  %s7, 1536, %s66, [#allocation9], 192, 192, 12
    $region33: #{tpu_custom_call.1} parent=1 // pred_fallthru
      _
    // Predicated region
    $region34: #{tpu_custom_call.1} parent=1 // pred_check
      _
    $region35: #{tpu_custom_call.1} parent=1 // pred_check_branch
      %73 = sbr.rel (0) target = $region37
    $region36: #{tpu_custom_call.1} parent=1 // pred_region
      _
    $region37: #{tpu_custom_call.1} parent=1 // pred_fallthru
      _
    // Predicated region
    $region38: #{tpu_custom_call.1} parent=1 // pred_check
      _
    $region39: #{tpu_custom_call.1} parent=1 // pred_check_branch
      %75 = sbr.rel (0) target = $region41
    $region40: #{tpu_custom_call.1} parent=1 // pred_region
      %76 = dma.done [#allocation3], 256
    $region41: #{tpu_custom_call.1} parent=1 // pred_fallthru
      _
    // Predicated region
    $region42: #{tpu_custom_call.1} parent=1 // pred_check
      _
    $region43: #{tpu_custom_call.1} parent=1 // pred_check_branch
      %78 = sbr.rel (0) target = $region45
    $region44: #{tpu_custom_call.1} parent=1 // pred_region
      %79 = dma.done [#allocation6], 1024
    $region45: #{tpu_custom_call.1} parent=1 // pred_fallthru
      _
    // Predicated region
    $region46: #{tpu_custom_call.1} parent=1 // pred_check
      _
    $region47: #{tpu_custom_call.1} parent=1 // pred_check_branch
      %81 = sbr.rel (0) target = $region49
    $region48: #{tpu_custom_call.1} parent=1 // pred_region
      %82 = dma.done [#allocation6], 2048
    $region49: #{tpu_custom_call.1} parent=1 // pred_fallthru
      _
    // Predicated region
    $region50: #{tpu_custom_call.1} parent=1 // pred_check
      _
    $region51: #{tpu_custom_call.1} parent=1 // pred_check_branch
      %84 = sbr.rel (0) target = $region53
    $region52: #{tpu_custom_call.1} parent=1 // pred_region
      %85 = dma.done [#allocation9], 1536
    $region53: #{tpu_custom_call.1} parent=1 // pred_fallthru
      _
    %v87 = vld [vmem:[#allocation2] sm:$0xff]
    %v88 = vld [vmem:[#allocation2 + $0x8] sm:$0xff]
    %v89 = vld [vmem:[%s1] sm:$0xf]
    %v90 = vld [vmem:[#allocation5] sm:$0xff]
    %v91 = vld [vmem:[#allocation5 + $0x8] sm:$0xff]
    %v92 = vld [vmem:[#allocation5 + $0x10] sm:$0xff]
    %v93 = vld [vmem:[#allocation5 + $0x18] sm:$0xff]
    %v94 = vld [vmem:[#allocation5 + $0x20] sm:$0xff]
    %v95 = vld [vmem:[#allocation5 + $0x28] sm:$0xff]
    %v96 = vld [vmem:[#allocation5 + $0x30] sm:$0xff]
    %v97 = vld [vmem:[#allocation5 + $0x38] sm:$0xff]
    %v98 = vld [vmem:[%s8] ss:$8 sm:$0xf]
    %v100 = vlaneseq
    %v101 = vshrl.u32 %v100, 7
    %v102 = vsub.s32 0, %v101
    %v103 = vrot.slane %v98, %v102
    %v104 = vlaneseq
    %v105 = vshrl.u32 %v104, 7
    %v106 = vsub.s32 1, %v105
    %v107 = vrot.slane %v98, %v106
    %v108 = vlaneseq
    %v109 = vshrl.u32 %v108, 7
    %v110 = vsub.s32 2, %v109
    %v111 = vrot.slane %v98, %v110
    %v112 = vlaneseq
    %v113 = vshrl.u32 %v112, 7
    %v114 = vsub.s32 3, %v113
    %v115 = vrot.slane %v98, %v114
    %v128 = vunpack.c.l.b16 %v90
    %v129 = vunpack.c.h.b16 %v90
    %v130 = vunpack.c.l.b16 %v91
    %v131 = vunpack.c.h.b16 %v91
    %v132 = vunpack.c.l.b16 %v92
    %v133 = vunpack.c.h.b16 %v92
    %v134 = vunpack.c.l.b16 %v93
    %v135 = vunpack.c.h.b16 %v93
    %v136 = vunpack.c.l.b16 %v94
    %v137 = vunpack.c.h.b16 %v94
    %v138 = vunpack.c.l.b16 %v95
    %v139 = vunpack.c.h.b16 %v95
    %v140 = vunpack.c.l.b16 %v96
    %v141 = vunpack.c.h.b16 %v96
    %v142 = vunpack.c.l.b16 %v97
    %v143 = vunpack.c.h.b16 %v97
    %v144 = vpack.c.b16 %v132, %v128
    %v145 = vpack.c.b16 %v133, %v129
    %v146 = vpack.c.b16 %v134, %v130
    %v147 = vpack.c.b16 %v135, %v131
    %v148 = vpack.c.b16 %v140, %v136
    %v149 = vpack.c.b16 %v141, %v137
    %v150 = vpack.c.b16 %v142, %v138
    %v151 = vpack.c.b16 %v143, %v139
    %vm160 = vcmask 261120
    %v162 = vsel %vm160, %v89, 0
    %164 = vmatprep.subr.bf16.mxu0 %v145
    %165 = vmatpush1.bf16.msra.mxu0 %v144
    %166 = vmatprep.subr.bf16.mxu0 %v149
    %167 = vmatpush1.bf16.msra.mxu0 %v148
    %168 = vmatprep.subr.bf16.mxu0 0
    %169 = vmatpush1.bf16.msra.mxu0 0
    %170 = vmatprep.subr.bf16.mxu0 0
    %171 = vmatpush1.bf16.msra.mxu0 0
    %172 = vmatprep.subr.bf16.mxu0 0
    %173 = vmatpush1.bf16.msra.mxu0 0
    %174 = vmatprep.subr.bf16.mxu0 0
    %175 = vmatpush1.bf16.msra.mxu0 0
    %176 = vmatprep.subr.bf16.mxu0 0
    %177 = vmatpush1.bf16.msra.mxu0 0
    %178 = vmatprep.subr.bf16.mxu0 0
    %179 = vmatpush1.bf16.msra.mxu0 0
    %180 = vmatprep.subr.bf16.mxu0 0
    %181 = vmatpush1.bf16.msra.mxu0 0
    %182 = vmatprep.subr.bf16.mxu0 0
    %183 = vmatpush1.bf16.msra.mxu0 0
    %184 = vmatprep.subr.bf16.mxu0 0
    %185 = vmatpush1.bf16.msra.mxu0 0
    %186 = vmatprep.subr.bf16.mxu0 0
    %187 = vmatpush1.bf16.msra.mxu0 0
    %188 = vmatprep.subr.bf16.mxu0 0
    %189 = vmatpush1.bf16.msra.mxu0 0
    %190 = vmatprep.subr.bf16.mxu0 0
    %191 = vmatpush1.bf16.msra.mxu0 0
    %192 = vmatprep.subr.bf16.mxu0 0
    %193 = vmatpush1.bf16.msra.mxu0 0
    %194 = vmatprep.subr.bf16.mxu0 0
    %195 = vmatpush1.bf16.msra.mxu0 0
    %196 = vmatprep.mubr.bf16.mxu0 0
    %197 = vmatmul.mubr.bf16.gmra.mrb[0].mxu0 %v162
    %v198 = vpop.f32.mrb[0].mxu0
    %v199 = vadd.f32 %v103, %v198
    %v200 = vpop.f32.mrb[0].mxu0
    %v201 = vadd.f32 %v107, %v200
    %v202 = vpop.f32.mrb[0].mxu0
    %v203 = vpop.f32.mrb[0].mxu0
    %204 = vdwg.mxu0
    %205 = vmatprep.subr.bf16.mxu0 %v147
    %206 = vmatpush1.bf16.msra.mxu0 %v146
    %207 = vmatprep.subr.bf16.mxu0 %v151
    %208 = vmatpush1.bf16.msra.mxu0 %v150
    %209 = vmatprep.subr.bf16.mxu0 0
    %210 = vmatpush1.bf16.msra.mxu0 0
    %211 = vmatprep.subr.bf16.mxu0 0
    %212 = vmatpush1.bf16.msra.mxu0 0
    %213 = vmatprep.subr.bf16.mxu0 0
    %214 = vmatpush1.bf16.msra.mxu0 0
    %215 = vmatprep.subr.bf16.mxu0 0
    %216 = vmatpush1.bf16.msra.mxu0 0
    %217 = vmatprep.subr.bf16.mxu0 0
    %218 = vmatpush1.bf16.msra.mxu0 0
    %219 = vmatprep.subr.bf16.mxu0 0
    %220 = vmatpush1.bf16.msra.mxu0 0
    %221 = vmatprep.subr.bf16.mxu0 0
    %222 = vmatpush1.bf16.msra.mxu0 0
    %223 = vmatprep.subr.bf16.mxu0 0
    %224 = vmatpush1.bf16.msra.mxu0 0
    %225 = vmatprep.subr.bf16.mxu0 0
    %226 = vmatpush1.bf16.msra.mxu0 0
    %227 = vmatprep.subr.bf16.mxu0 0
    %228 = vmatpush1.bf16.msra.mxu0 0
    %229 = vmatprep.subr.bf16.mxu0 0
    %230 = vmatpush1.bf16.msra.mxu0 0
    %231 = vmatprep.subr.bf16.mxu0 0
    %232 = vmatpush1.bf16.msra.mxu0 0
    %233 = vmatprep.subr.bf16.mxu0 0
    %234 = vmatpush1.bf16.msra.mxu0 0
    %235 = vmatprep.subr.bf16.mxu0 0
    %236 = vmatpush1.bf16.msra.mxu0 0
    %237 = vmatprep.mubr.bf16.mxu0 0
    %238 = vmatmul.mubr.bf16.gmra.mrb[0].mxu0 %v162
    %v239 = vpop.f32.mrb[0].mxu0
    %v240 = vadd.f32 %v111, %v239
    %v241 = vpop.f32.mrb[0].mxu0
    %v242 = vadd.f32 %v115, %v241
    %v243 = vpop.f32.mrb[0].mxu0
    %v244 = vpop.f32.mrb[0].mxu0
    %245 = vdwg.mxu0
    %v246 = vld [vmem:[%s3] sm:$0xff]
    %v247 = vld [vmem:[%s3 + $0x8] sm:$0xff]
    %v248 = vld [vmem:[%s3 + $0x10] sm:$0xff]
    %v249 = vld [vmem:[%s3 + $0x18] sm:$0xff]
    %v250 = vld [vmem:[%s3 + $0x20] sm:$0xff]
    %v251 = vld [vmem:[%s3 + $0x28] sm:$0xff]
    %v252 = vld [vmem:[%s3 + $0x30] sm:$0xff]
    %v253 = vld [vmem:[%s3 + $0x38] sm:$0xff]
    %v254 = vld [vmem:[%s3 + $0x40] sm:$0xff]
    %v255 = vld [vmem:[%s3 + $0x48] sm:$0xff]
    %v256 = vld [vmem:[%s3 + $0x50] sm:$0xff]
    %v257 = vld [vmem:[%s3 + $0x58] sm:$0xff]
    %v258 = vld [vmem:[%s3 + $0x60] sm:$0xff]
    %v259 = vld [vmem:[%s3 + $0x68] sm:$0xff]
    %v260 = vld [vmem:[%s3 + $0x70] sm:$0xff]
    %v261 = vld [vmem:[%s3 + $0x78] sm:$0xff]
    %v262 = vld [vmem:[%s3 + $0x80] sm:$0xff]
    %v263 = vld [vmem:[%s3 + $0x88] sm:$0xff]
    %v264 = vld [vmem:[%s3 + $0x90] sm:$0xff]
    %v265 = vld [vmem:[%s3 + $0x98] sm:$0xff]
    %v266 = vld [vmem:[%s3 + $0xa0] sm:$0xff]
    %v267 = vld [vmem:[%s3 + $0xa8] sm:$0xff]
    %v268 = vld [vmem:[%s3 + $0xb0] sm:$0xff]
    %v269 = vld [vmem:[%s3 + $0xb8] sm:$0xff]
    %v270 = vld [vmem:[%s3 + $0xc0] sm:$0xff]
    %v271 = vld [vmem:[%s3 + $0xc8] sm:$0xff]
    %v272 = vld [vmem:[%s3 + $0xd0] sm:$0xff]
    %v273 = vld [vmem:[%s3 + $0xd8] sm:$0xff]
    %v274 = vld [vmem:[%s3 + $0xe0] sm:$0xff]
    %v275 = vld [vmem:[%s3 + $0xe8] sm:$0xff]
    %v276 = vld [vmem:[%s3 + $0xf0] sm:$0xff]
    %v277 = vld [vmem:[%s3 + $0xf8] sm:$0xff]
    %v278 = vld [vmem:[%s3 + $0x100] sm:$0xff]
    %v279 = vld [vmem:[%s3 + $0x108] sm:$0xff]
    %v280 = vld [vmem:[%s3 + $0x110] sm:$0xff]
    %v281 = vld [vmem:[%s3 + $0x118] sm:$0xff]
    %v282 = vld [vmem:[%s3 + $0x120] sm:$0xff]
    %v283 = vld [vmem:[%s3 + $0x128] sm:$0xff]
    %v284 = vld [vmem:[%s3 + $0x130] sm:$0xff]
    %v285 = vld [vmem:[%s3 + $0x138] sm:$0xff]
    %v286 = vld [vmem:[%s3 + $0x140] sm:$0xff]
    %v287 = vld [vmem:[%s3 + $0x148] sm:$0xff]
    %v288 = vld [vmem:[%s3 + $0x150] sm:$0xff]
    %v289 = vld [vmem:[%s3 + $0x158] sm:$0xff]
    %v290 = vld [vmem:[%s3 + $0x160] sm:$0xff]
    %v291 = vld [vmem:[%s3 + $0x168] sm:$0xff]
    %v292 = vld [vmem:[%s3 + $0x170] sm:$0xff]
    %v293 = vld [vmem:[%s3 + $0x178] sm:$0xff]
    %v294 = vld [vmem:[%s3 + $0x180] sm:$0xff]
    %v295 = vld [vmem:[%s3 + $0x188] sm:$0xff]
    %v296 = vld [vmem:[%s3 + $0x190] sm:$0xff]
    %v297 = vld [vmem:[%s3 + $0x198] sm:$0xff]
    %v298 = vld [vmem:[%s3 + $0x1a0] sm:$0xff]
    %v299 = vld [vmem:[%s3 + $0x1a8] sm:$0xff]
    %v300 = vld [vmem:[%s3 + $0x1b0] sm:$0xff]
    %v301 = vld [vmem:[%s3 + $0x1b8] sm:$0xff]
    %v302 = vld [vmem:[%s3 + $0x1c0] sm:$0xff]
    %v303 = vld [vmem:[%s3 + $0x1c8] sm:$0xff]
    %v304 = vld [vmem:[%s3 + $0x1d0] sm:$0xff]
    %v305 = vld [vmem:[%s3 + $0x1d8] sm:$0xff]
    %v306 = vld [vmem:[%s3 + $0x1e0] sm:$0xff]
    %v307 = vld [vmem:[%s3 + $0x1e8] sm:$0xff]
    %v308 = vld [vmem:[%s3 + $0x1f0] sm:$0xff]
    %v309 = vld [vmem:[%s3 + $0x1f8] sm:$0xff]
    %v310 = vld [vmem:[%s3 + $0x200] sm:$0xff]
    %v311 = vld [vmem:[%s3 + $0x208] sm:$0xff]
    %v312 = vld [vmem:[%s3 + $0x210] sm:$0xff]
    %v313 = vld [vmem:[%s3 + $0x218] sm:$0xff]
    %v314 = vld [vmem:[%s3 + $0x220] sm:$0xff]
    %v315 = vld [vmem:[%s3 + $0x228] sm:$0xff]
    %v316 = vld [vmem:[%s3 + $0x230] sm:$0xff]
    %v317 = vld [vmem:[%s3 + $0x238] sm:$0xff]
    %v318 = vld [vmem:[%s3 + $0x240] sm:$0xff]
    %v319 = vld [vmem:[%s3 + $0x248] sm:$0xff]
    %v320 = vld [vmem:[%s3 + $0x250] sm:$0xff]
    %v321 = vld [vmem:[%s3 + $0x258] sm:$0xff]
    %v322 = vld [vmem:[%s3 + $0x260] sm:$0xff]
    %v323 = vld [vmem:[%s3 + $0x268] sm:$0xff]
    %v324 = vld [vmem:[%s3 + $0x270] sm:$0xff]
    %v325 = vld [vmem:[%s3 + $0x278] sm:$0xff]
    %v326 = vld [vmem:[%s3 + $0x280] sm:$0xff]
    %v327 = vld [vmem:[%s3 + $0x288] sm:$0xff]
    %v328 = vld [vmem:[%s3 + $0x290] sm:$0xff]
    %v329 = vld [vmem:[%s3 + $0x298] sm:$0xff]
    %v330 = vld [vmem:[%s3 + $0x2a0] sm:$0xff]
    %v331 = vld [vmem:[%s3 + $0x2a8] sm:$0xff]
    %v332 = vld [vmem:[%s3 + $0x2b0] sm:$0xff]
    %v333 = vld [vmem:[%s3 + $0x2b8] sm:$0xff]
    %v334 = vld [vmem:[%s3 + $0x2c0] sm:$0xff]
    %v335 = vld [vmem:[%s3 + $0x2c8] sm:$0xff]
    %v336 = vld [vmem:[%s3 + $0x2d0] sm:$0xff]
    %v337 = vld [vmem:[%s3 + $0x2d8] sm:$0xff]
    %v338 = vld [vmem:[%s3 + $0x2e0] sm:$0xff]
    %v339 = vld [vmem:[%s3 + $0x2e8] sm:$0xff]
    %v340 = vld [vmem:[%s3 + $0x2f0] sm:$0xff]
    %v341 = vld [vmem:[%s3 + $0x2f8] sm:$0xff]
    %v342 = vld [vmem:[%s3 + $0x300] sm:$0xff]
    %v343 = vld [vmem:[%s3 + $0x308] sm:$0xff]
    %v344 = vld [vmem:[%s3 + $0x310] sm:$0xff]
    %v345 = vld [vmem:[%s3 + $0x318] sm:$0xff]
    %v346 = vld [vmem:[%s3 + $0x320] sm:$0xff]
    %v347 = vld [vmem:[%s3 + $0x328] sm:$0xff]
    %v348 = vld [vmem:[%s3 + $0x330] sm:$0xff]
    %v349 = vld [vmem:[%s3 + $0x338] sm:$0xff]
    %v350 = vld [vmem:[%s3 + $0x340] sm:$0xff]
    %v351 = vld [vmem:[%s3 + $0x348] sm:$0xff]
    %v352 = vld [vmem:[%s3 + $0x350] sm:$0xff]
    %v353 = vld [vmem:[%s3 + $0x358] sm:$0xff]
    %v354 = vld [vmem:[%s3 + $0x360] sm:$0xff]
    %v355 = vld [vmem:[%s3 + $0x368] sm:$0xff]
    %v356 = vld [vmem:[%s3 + $0x370] sm:$0xff]
    %v357 = vld [vmem:[%s3 + $0x378] sm:$0xff]
    %v358 = vld [vmem:[%s3 + $0x380] sm:$0xff]
    %v359 = vld [vmem:[%s3 + $0x388] sm:$0xff]
    %v360 = vld [vmem:[%s3 + $0x390] sm:$0xff]
    %v361 = vld [vmem:[%s3 + $0x398] sm:$0xff]
    %v362 = vld [vmem:[%s3 + $0x3a0] sm:$0xff]
    %v363 = vld [vmem:[%s3 + $0x3a8] sm:$0xff]
    %v364 = vld [vmem:[%s3 + $0x3b0] sm:$0xff]
    %v365 = vld [vmem:[%s3 + $0x3b8] sm:$0xff]
    %v366 = vld [vmem:[%s3 + $0x3c0] sm:$0xff]
    %v367 = vld [vmem:[%s3 + $0x3c8] sm:$0xff]
    %v368 = vld [vmem:[%s3 + $0x3d0] sm:$0xff]
    %v369 = vld [vmem:[%s3 + $0x3d8] sm:$0xff]
    %v370 = vld [vmem:[%s3 + $0x3e0] sm:$0xff]
    %v371 = vld [vmem:[%s3 + $0x3e8] sm:$0xff]
    %v372 = vld [vmem:[%s3 + $0x3f0] sm:$0xff]
    %v373 = vld [vmem:[%s3 + $0x3f8] sm:$0xff]
    %s374 = scalar_lea.vmem %s8, 1
    %v375 = vld [vmem:[%s374] ss:$8 sm:$0xf]
    %v377 = vlaneseq
    %v378 = vshrl.u32 %v377, 7
    %v379 = vsub.s32 0, %v378
    %v380 = vrot.slane %v375, %v379
    %v381 = vlaneseq
    %v382 = vshrl.u32 %v381, 7
    %v383 = vsub.s32 1, %v382
    %v384 = vrot.slane %v375, %v383
    %v385 = vlaneseq
    %v386 = vshrl.u32 %v385, 7
    %v387 = vsub.s32 2, %v386
    %v388 = vrot.slane %v375, %v387
    %v389 = vlaneseq
    %v390 = vshrl.u32 %v389, 7
    %v391 = vsub.s32 3, %v390
    %v392 = vrot.slane %v375, %v391
    %v399 = vunpack.c.l.b16 %v87
    %v400 = vunpack.c.h.b16 %v87
    %v401 = vunpack.c.l.b16 %v88
    %v402 = vunpack.c.h.b16 %v88
    %v403 = vpack.c.b16 %v399, %v399
    %v404 = vpack.c.b16 %v400, %v400
    %v405 = vpack.c.b16 %v401, %v401
    %v406 = vpack.c.b16 %v402, %v402
    %v539 = vunpack.c.l.b16 %v246
    %v540 = vunpack.c.h.b16 %v246
    %v541 = vunpack.c.l.b16 %v247
    %v542 = vunpack.c.h.b16 %v247
    %v543 = vunpack.c.l.b16 %v248
    %v544 = vunpack.c.h.b16 %v248
    %v545 = vunpack.c.l.b16 %v249
    %v546 = vunpack.c.h.b16 %v249
    %v547 = vunpack.c.l.b16 %v250
    %v548 = vunpack.c.h.b16 %v250
    %v549 = vunpack.c.l.b16 %v251
    %v550 = vunpack.c.h.b16 %v251
    %v551 = vunpack.c.l.b16 %v252
    %v552 = vunpack.c.h.b16 %v252
    %v553 = vunpack.c.l.b16 %v253
    %v554 = vunpack.c.h.b16 %v253
    %v555 = vunpack.c.l.b16 %v254
    %v556 = vunpack.c.h.b16 %v254
    %v557 = vunpack.c.l.b16 %v255
    %v558 = vunpack.c.h.b16 %v255
    %v559 = vunpack.c.l.b16 %v256
    %v560 = vunpack.c.h.b16 %v256
    %v561 = vunpack.c.l.b16 %v257
    %v562 = vunpack.c.h.b16 %v257
    %v563 = vunpack.c.l.b16 %v258
    %v564 = vunpack.c.h.b16 %v258
    %v565 = vunpack.c.l.b16 %v259
    %v566 = vunpack.c.h.b16 %v259
    %v567 = vunpack.c.l.b16 %v260
    %v568 = vunpack.c.h.b16 %v260
    %v569 = vunpack.c.l.b16 %v261
    %v570 = vunpack.c.h.b16 %v261
    %v571 = vunpack.c.l.b16 %v262
    %v572 = vunpack.c.h.b16 %v262
    %v573 = vunpack.c.l.b16 %v263
    %v574 = vunpack.c.h.b16 %v263
    %v575 = vunpack.c.l.b16 %v264
    %v576 = vunpack.c.h.b16 %v264
    %v577 = vunpack.c.l.b16 %v265
    %v578 = vunpack.c.h.b16 %v265
    %v579 = vunpack.c.l.b16 %v266
    %v580 = vunpack.c.h.b16 %v266
    %v581 = vunpack.c.l.b16 %v267
    %v582 = vunpack.c.h.b16 %v267
    %v583 = vunpack.c.l.b16 %v268
    %v584 = vunpack.c.h.b16 %v268
    %v585 = vunpack.c.l.b16 %v269
    %v586 = vunpack.c.h.b16 %v269
    %v587 = vunpack.c.l.b16 %v270
    %v588 = vunpack.c.h.b16 %v270
    %v589 = vunpack.c.l.b16 %v271
    %v590 = vunpack.c.h.b16 %v271
    %v591 = vunpack.c.l.b16 %v272
    %v592 = vunpack.c.h.b16 %v272
    %v593 = vunpack.c.l.b16 %v273
    %v594 = vunpack.c.h.b16 %v273
    %v595 = vunpack.c.l.b16 %v274
    %v596 = vunpack.c.h.b16 %v274
    %v597 = vunpack.c.l.b16 %v275
    %v598 = vunpack.c.h.b16 %v275
    %v599 = vunpack.c.l.b16 %v276
    %v600 = vunpack.c.h.b16 %v276
    %v601 = vunpack.c.l.b16 %v277
    %v602 = vunpack.c.h.b16 %v277
    %v603 = vunpack.c.l.b16 %v278
    %v604 = vunpack.c.h.b16 %v278
    %v605 = vunpack.c.l.b16 %v279
    %v606 = vunpack.c.h.b16 %v279
    %v607 = vunpack.c.l.b16 %v280
    %v608 = vunpack.c.h.b16 %v280
    %v609 = vunpack.c.l.b16 %v281
    %v610 = vunpack.c.h.b16 %v281
    %v611 = vunpack.c.l.b16 %v282
    %v612 = vunpack.c.h.b16 %v282
    %v613 = vunpack.c.l.b16 %v283
    %v614 = vunpack.c.h.b16 %v283
    %v615 = vunpack.c.l.b16 %v284
    %v616 = vunpack.c.h.b16 %v284
    %v617 = vunpack.c.l.b16 %v285
    %v618 = vunpack.c.h.b16 %v285
    %v619 = vunpack.c.l.b16 %v286
    %v620 = vunpack.c.h.b16 %v286
    %v621 = vunpack.c.l.b16 %v287
    %v622 = vunpack.c.h.b16 %v287
    %v623 = vunpack.c.l.b16 %v288
    %v624 = vunpack.c.h.b16 %v288
    %v625 = vunpack.c.l.b16 %v289
    %v626 = vunpack.c.h.b16 %v289
    %v627 = vunpack.c.l.b16 %v290
    %v628 = vunpack.c.h.b16 %v290
    %v629 = vunpack.c.l.b16 %v291
    %v630 = vunpack.c.h.b16 %v291
    %v631 = vunpack.c.l.b16 %v292
    %v632 = vunpack.c.h.b16 %v292
    %v633 = vunpack.c.l.b16 %v293
    %v634 = vunpack.c.h.b16 %v293
    %v635 = vunpack.c.l.b16 %v294
    %v636 = vunpack.c.h.b16 %v294
    %v637 = vunpack.c.l.b16 %v295
    %v638 = vunpack.c.h.b16 %v295
    %v639 = vunpack.c.l.b16 %v296
    %v640 = vunpack.c.h.b16 %v296
    %v641 = vunpack.c.l.b16 %v297
    %v642 = vunpack.c.h.b16 %v297
    %v643 = vunpack.c.l.b16 %v298
    %v644 = vunpack.c.h.b16 %v298
    %v645 = vunpack.c.l.b16 %v299
    %v646 = vunpack.c.h.b16 %v299
    %v647 = vunpack.c.l.b16 %v300
    %v648 = vunpack.c.h.b16 %v300
    %v649 = vunpack.c.l.b16 %v301
    %v650 = vunpack.c.h.b16 %v301
    %v651 = vunpack.c.l.b16 %v302
    %v652 = vunpack.c.h.b16 %v302
    %v653 = vunpack.c.l.b16 %v303
    %v654 = vunpack.c.h.b16 %v303
    %v655 = vunpack.c.l.b16 %v304
    %v656 = vunpack.c.h.b16 %v304
    %v657 = vunpack.c.l.b16 %v305
    %v658 = vunpack.c.h.b16 %v305
    %v659 = vunpack.c.l.b16 %v306
    %v660 = vunpack.c.h.b16 %v306
    %v661 = vunpack.c.l.b16 %v307
    %v662 = vunpack.c.h.b16 %v307
    %v663 = vunpack.c.l.b16 %v308
    %v664 = vunpack.c.h.b16 %v308
    %v665 = vunpack.c.l.b16 %v309
    %v666 = vunpack.c.h.b16 %v309
    %v667 = vunpack.c.l.b16 %v310
    %v668 = vunpack.c.h.b16 %v310
    %v669 = vunpack.c.l.b16 %v311
    %v670 = vunpack.c.h.b16 %v311
    %v671 = vunpack.c.l.b16 %v312
    %v672 = vunpack.c.h.b16 %v312
    %v673 = vunpack.c.l.b16 %v313
    %v674 = vunpack.c.h.b16 %v313
    %v675 = vunpack.c.l.b16 %v314
    %v676 = vunpack.c.h.b16 %v314
    %v677 = vunpack.c.l.b16 %v315
    %v678 = vunpack.c.h.b16 %v315
    %v679 = vunpack.c.l.b16 %v316
    %v680 = vunpack.c.h.b16 %v316
    %v681 = vunpack.c.l.b16 %v317
    %v682 = vunpack.c.h.b16 %v317
    %v683 = vunpack.c.l.b16 %v318
    %v684 = vunpack.c.h.b16 %v318
    %v685 = vunpack.c.l.b16 %v319
    %v686 = vunpack.c.h.b16 %v319
    %v687 = vunpack.c.l.b16 %v320
    %v688 = vunpack.c.h.b16 %v320
    %v689 = vunpack.c.l.b16 %v321
    %v690 = vunpack.c.h.b16 %v321
    %v691 = vunpack.c.l.b16 %v322
    %v692 = vunpack.c.h.b16 %v322
    %v693 = vunpack.c.l.b16 %v323
    %v694 = vunpack.c.h.b16 %v323
    %v695 = vunpack.c.l.b16 %v324
    %v696 = vunpack.c.h.b16 %v324
    %v697 = vunpack.c.l.b16 %v325
    %v698 = vunpack.c.h.b16 %v325
    %v699 = vunpack.c.l.b16 %v326
    %v700 = vunpack.c.h.b16 %v326
    %v701 = vunpack.c.l.b16 %v327
    %v702 = vunpack.c.h.b16 %v327
    %v703 = vunpack.c.l.b16 %v328
    %v704 = vunpack.c.h.b16 %v328
    %v705 = vunpack.c.l.b16 %v329
    %v706 = vunpack.c.h.b16 %v329
    %v707 = vunpack.c.l.b16 %v330
    %v708 = vunpack.c.h.b16 %v330
    %v709 = vunpack.c.l.b16 %v331
    %v710 = vunpack.c.h.b16 %v331
    %v711 = vunpack.c.l.b16 %v332
    %v712 = vunpack.c.h.b16 %v332
    %v713 = vunpack.c.l.b16 %v333
    %v714 = vunpack.c.h.b16 %v333
    %v715 = vunpack.c.l.b16 %v334
    %v716 = vunpack.c.h.b16 %v334
    %v717 = vunpack.c.l.b16 %v335
    %v718 = vunpack.c.h.b16 %v335
    %v719 = vunpack.c.l.b16 %v336
    %v720 = vunpack.c.h.b16 %v336
    %v721 = vunpack.c.l.b16 %v337
    %v722 = vunpack.c.h.b16 %v337
    %v723 = vunpack.c.l.b16 %v338
    %v724 = vunpack.c.h.b16 %v338
    %v725 = vunpack.c.l.b16 %v339
    %v726 = vunpack.c.h.b16 %v339
    %v727 = vunpack.c.l.b16 %v340
    %v728 = vunpack.c.h.b16 %v340
    %v729 = vunpack.c.l.b16 %v341
    %v730 = vunpack.c.h.b16 %v341
    %v731 = vunpack.c.l.b16 %v342
    %v732 = vunpack.c.h.b16 %v342
    %v733 = vunpack.c.l.b16 %v343
    %v734 = vunpack.c.h.b16 %v343
    %v735 = vunpack.c.l.b16 %v344
    %v736 = vunpack.c.h.b16 %v344
    %v737 = vunpack.c.l.b16 %v345
    %v738 = vunpack.c.h.b16 %v345
    %v739 = vunpack.c.l.b16 %v346
    %v740 = vunpack.c.h.b16 %v346
    %v741 = vunpack.c.l.b16 %v347
    %v742 = vunpack.c.h.b16 %v347
    %v743 = vunpack.c.l.b16 %v348
    %v744 = vunpack.c.h.b16 %v348
    %v745 = vunpack.c.l.b16 %v349
    %v746 = vunpack.c.h.b16 %v349
    %v747 = vunpack.c.l.b16 %v350
    %v748 = vunpack.c.h.b16 %v350
    %v749 = vunpack.c.l.b16 %v351
    %v750 = vunpack.c.h.b16 %v351
    %v751 = vunpack.c.l.b16 %v352
    %v752 = vunpack.c.h.b16 %v352
    %v753 = vunpack.c.l.b16 %v353
    %v754 = vunpack.c.h.b16 %v353
    %v755 = vunpack.c.l.b16 %v354
    %v756 = vunpack.c.h.b16 %v354
    %v757 = vunpack.c.l.b16 %v355
    %v758 = vunpack.c.h.b16 %v355
    %v759 = vunpack.c.l.b16 %v356
    %v760 = vunpack.c.h.b16 %v356
    %v761 = vunpack.c.l.b16 %v357
    %v762 = vunpack.c.h.b16 %v357
    %v763 = vunpack.c.l.b16 %v358
    %v764 = vunpack.c.h.b16 %v358
    %v765 = vunpack.c.l.b16 %v359
    %v766 = vunpack.c.h.b16 %v359
    %v767 = vunpack.c.l.b16 %v360
    %v768 = vunpack.c.h.b16 %v360
    %v769 = vunpack.c.l.b16 %v361
    %v770 = vunpack.c.h.b16 %v361
    %v771 = vunpack.c.l.b16 %v362
    %v772 = vunpack.c.h.b16 %v362
    %v773 = vunpack.c.l.b16 %v363
    %v774 = vunpack.c.h.b16 %v363
    %v775 = vunpack.c.l.b16 %v364
    %v776 = vunpack.c.h.b16 %v364
    %v777 = vunpack.c.l.b16 %v365
    %v778 = vunpack.c.h.b16 %v365
    %v779 = vunpack.c.l.b16 %v366
    %v780 = vunpack.c.h.b16 %v366
    %v781 = vunpack.c.l.b16 %v367
    %v782 = vunpack.c.h.b16 %v367
    %v783 = vunpack.c.l.b16 %v368
    %v784 = vunpack.c.h.b16 %v368
    %v785 = vunpack.c.l.b16 %v369
    %v786 = vunpack.c.h.b16 %v369
    %v787 = vunpack.c.l.b16 %v370
    %v788 = vunpack.c.h.b16 %v370
    %v789 = vunpack.c.l.b16 %v371
    %v790 = vunpack.c.h.b16 %v371
    %v791 = vunpack.c.l.b16 %v372
    %v792 = vunpack.c.h.b16 %v372
    %v793 = vunpack.c.l.b16 %v373
    %v794 = vunpack.c.h.b16 %v373
    %v795 = vpack.c.b16 %v543, %v539
    %v796 = vpack.c.b16 %v544, %v540
    %v797 = vpack.c.b16 %v545, %v541
    %v798 = vpack.c.b16 %v546, %v542
    %v799 = vpack.c.b16 %v551, %v547
    %v800 = vpack.c.b16 %v552, %v548
    %v801 = vpack.c.b16 %v553, %v549
    %v802 = vpack.c.b16 %v554, %v550
    %v803 = vpack.c.b16 %v559, %v555
    %v804 = vpack.c.b16 %v560, %v556
    %v805 = vpack.c.b16 %v561, %v557
    %v806 = vpack.c.b16 %v562, %v558
    %v807 = vpack.c.b16 %v567, %v563
    %v808 = vpack.c.b16 %v568, %v564
    %v809 = vpack.c.b16 %v569, %v565
    %v810 = vpack.c.b16 %v570, %v566
    %v811 = vpack.c.b16 %v575, %v571
    %v812 = vpack.c.b16 %v576, %v572
    %v813 = vpack.c.b16 %v577, %v573
    %v814 = vpack.c.b16 %v578, %v574
    %v815 = vpack.c.b16 %v583, %v579
    %v816 = vpack.c.b16 %v584, %v580
    %v817 = vpack.c.b16 %v585, %v581
    %v818 = vpack.c.b16 %v586, %v582
    %v819 = vpack.c.b16 %v591, %v587
    %v820 = vpack.c.b16 %v592, %v588
    %v821 = vpack.c.b16 %v593, %v589
    %v822 = vpack.c.b16 %v594, %v590
    %v823 = vpack.c.b16 %v599, %v595
    %v824 = vpack.c.b16 %v600, %v596
    %v825 = vpack.c.b16 %v601, %v597
    %v826 = vpack.c.b16 %v602, %v598
    %v827 = vpack.c.b16 %v607, %v603
    %v828 = vpack.c.b16 %v608, %v604
    %v829 = vpack.c.b16 %v609, %v605
    %v830 = vpack.c.b16 %v610, %v606
    %v831 = vpack.c.b16 %v615, %v611
    %v832 = vpack.c.b16 %v616, %v612
    %v833 = vpack.c.b16 %v617, %v613
    %v834 = vpack.c.b16 %v618, %v614
    %v835 = vpack.c.b16 %v623, %v619
    %v836 = vpack.c.b16 %v624, %v620
    %v837 = vpack.c.b16 %v625, %v621
    %v838 = vpack.c.b16 %v626, %v622
    %v839 = vpack.c.b16 %v631, %v627
    %v840 = vpack.c.b16 %v632, %v628
    %v841 = vpack.c.b16 %v633, %v629
    %v842 = vpack.c.b16 %v634, %v630
    %v843 = vpack.c.b16 %v639, %v635
    %v844 = vpack.c.b16 %v640, %v636
    %v845 = vpack.c.b16 %v641, %v637
    %v846 = vpack.c.b16 %v642, %v638
    %v847 = vpack.c.b16 %v647, %v643
    %v848 = vpack.c.b16 %v648, %v644
    %v849 = vpack.c.b16 %v649, %v645
    %v850 = vpack.c.b16 %v650, %v646
    %v851 = vpack.c.b16 %v655, %v651
    %v852 = vpack.c.b16 %v656, %v652
    %v853 = vpack.c.b16 %v657, %v653
    %v854 = vpack.c.b16 %v658, %v654
    %v855 = vpack.c.b16 %v663, %v659
    %v856 = vpack.c.b16 %v664, %v660
    %v857 = vpack.c.b16 %v665, %v661
    %v858 = vpack.c.b16 %v666, %v662
    %v859 = vpack.c.b16 %v671, %v667
    %v860 = vpack.c.b16 %v672, %v668
    %v861 = vpack.c.b16 %v673, %v669
    %v862 = vpack.c.b16 %v674, %v670
    %v863 = vpack.c.b16 %v679, %v675
    %v864 = vpack.c.b16 %v680, %v676
    %v865 = vpack.c.b16 %v681, %v677
    %v866 = vpack.c.b16 %v682, %v678
    %v867 = vpack.c.b16 %v687, %v683
    %v868 = vpack.c.b16 %v688, %v684
    %v869 = vpack.c.b16 %v689, %v685
    %v870 = vpack.c.b16 %v690, %v686
    %v871 = vpack.c.b16 %v695, %v691
    %v872 = vpack.c.b16 %v696, %v692
    %v873 = vpack.c.b16 %v697, %v693
    %v874 = vpack.c.b16 %v698, %v694
    %v875 = vpack.c.b16 %v703, %v699
    %v876 = vpack.c.b16 %v704, %v700
    %v877 = vpack.c.b16 %v705, %v701
    %v878 = vpack.c.b16 %v706, %v702
    %v879 = vpack.c.b16 %v711, %v707
    %v880 = vpack.c.b16 %v712, %v708
    %v881 = vpack.c.b16 %v713, %v709
    %v882 = vpack.c.b16 %v714, %v710
    %v883 = vpack.c.b16 %v719, %v715
    %v884 = vpack.c.b16 %v720, %v716
    %v885 = vpack.c.b16 %v721, %v717
    %v886 = vpack.c.b16 %v722, %v718
    %v887 = vpack.c.b16 %v727, %v723
    %v888 = vpack.c.b16 %v728, %v724
    %v889 = vpack.c.b16 %v729, %v725
    %v890 = vpack.c.b16 %v730, %v726
    %v891 = vpack.c.b16 %v735, %v731
    %v892 = vpack.c.b16 %v736, %v732
    %v893 = vpack.c.b16 %v737, %v733
    %v894 = vpack.c.b16 %v738, %v734
    %v895 = vpack.c.b16 %v743, %v739
    %v896 = vpack.c.b16 %v744, %v740
    %v897 = vpack.c.b16 %v745, %v741
    %v898 = vpack.c.b16 %v746, %v742
    %v899 = vpack.c.b16 %v751, %v747
    %v900 = vpack.c.b16 %v752, %v748
    %v901 = vpack.c.b16 %v753, %v749
    %v902 = vpack.c.b16 %v754, %v750
    %v903 = vpack.c.b16 %v759, %v755
    %v904 = vpack.c.b16 %v760, %v756
    %v905 = vpack.c.b16 %v761, %v757
    %v906 = vpack.c.b16 %v762, %v758
    %v907 = vpack.c.b16 %v767, %v763
    %v908 = vpack.c.b16 %v768, %v764
    %v909 = vpack.c.b16 %v769, %v765
    %v910 = vpack.c.b16 %v770, %v766
    %v911 = vpack.c.b16 %v775, %v771
    %v912 = vpack.c.b16 %v776, %v772
    %v913 = vpack.c.b16 %v777, %v773
    %v914 = vpack.c.b16 %v778, %v774
    %v915 = vpack.c.b16 %v783, %v779
    %v916 = vpack.c.b16 %v784, %v780
    %v917 = vpack.c.b16 %v785, %v781
    %v918 = vpack.c.b16 %v786, %v782
    %v919 = vpack.c.b16 %v791, %v787
    %v920 = vpack.c.b16 %v792, %v788
    %v921 = vpack.c.b16 %v793, %v789
    %v922 = vpack.c.b16 %v794, %v790
    %1051 = vmatprep.subr.bf16.mxu0 %v796
    %1052 = vmatpush1.bf16.msra.mxu0 %v795
    %1053 = vmatprep.subr.bf16.mxu0 %v800
    %1054 = vmatpush1.bf16.msra.mxu0 %v799
    %1055 = vmatprep.subr.bf16.mxu0 %v804
    %1056 = vmatpush1.bf16.msra.mxu0 %v803
    %1057 = vmatprep.subr.bf16.mxu0 %v808
    %1058 = vmatpush1.bf16.msra.mxu0 %v807
    %1059 = vmatprep.subr.bf16.mxu0 %v812
    %1060 = vmatpush1.bf16.msra.mxu0 %v811
    %1061 = vmatprep.subr.bf16.mxu0 %v816
    %1062 = vmatpush1.bf16.msra.mxu0 %v815
    %1063 = vmatprep.subr.bf16.mxu0 %v820
    %1064 = vmatpush1.bf16.msra.mxu0 %v819
    %1065 = vmatprep.subr.bf16.mxu0 %v824
    %1066 = vmatpush1.bf16.msra.mxu0 %v823
    %1067 = vmatprep.subr.bf16.mxu0 %v828
    %1068 = vmatpush1.bf16.msra.mxu0 %v827
    %1069 = vmatprep.subr.bf16.mxu0 %v832
    %1070 = vmatpush1.bf16.msra.mxu0 %v831
    %1071 = vmatprep.subr.bf16.mxu0 %v836
    %1072 = vmatpush1.bf16.msra.mxu0 %v835
    %1073 = vmatprep.subr.bf16.mxu0 %v840
    %1074 = vmatpush1.bf16.msra.mxu0 %v839
    %1075 = vmatprep.subr.bf16.mxu0 %v844
    %1076 = vmatpush1.bf16.msra.mxu0 %v843
    %1077 = vmatprep.subr.bf16.mxu0 %v848
    %1078 = vmatpush1.bf16.msra.mxu0 %v847
    %1079 = vmatprep.subr.bf16.mxu0 %v852
    %1080 = vmatpush1.bf16.msra.mxu0 %v851
    %1081 = vmatprep.subr.bf16.mxu0 %v856
    %1082 = vmatpush1.bf16.msra.mxu0 %v855
    %1083 = vmatprep.mubr.bf16.mxu0 %v404
    %1084 = vmatmul.mubr.bf16.gmra.mrb[0].mxu0 %v403
    %v1085 = vpop.f32.mrb[0].mxu0
    %v1086 = vadd.f32 %v380, %v1085
    %v1087 = vpop.f32.mrb[0].mxu0
    %v1088 = vadd.f32 %v384, %v1087
    %v1089 = vpop.f32.mrb[0].mxu0
    %v1090 = vpop.f32.mrb[0].mxu0
    %1091 = vdwg.mxu0
    %1092 = vmatprep.subr.bf16.mxu0 %v860
    %1093 = vmatpush1.bf16.msra.mxu0 %v859
    %1094 = vmatprep.subr.bf16.mxu0 %v864
    %1095 = vmatpush1.bf16.msra.mxu0 %v863
    %1096 = vmatprep.subr.bf16.mxu0 %v868
    %1097 = vmatpush1.bf16.msra.mxu0 %v867
    %1098 = vmatprep.subr.bf16.mxu0 %v872
    %1099 = vmatpush1.bf16.msra.mxu0 %v871
    %1100 = vmatprep.subr.bf16.mxu0 %v876
    %1101 = vmatpush1.bf16.msra.mxu0 %v875
    %1102 = vmatprep.subr.bf16.mxu0 %v880
    %1103 = vmatpush1.bf16.msra.mxu0 %v879
    %1104 = vmatprep.subr.bf16.mxu0 %v884
    %1105 = vmatpush1.bf16.msra.mxu0 %v883
    %1106 = vmatprep.subr.bf16.mxu0 %v888
    %1107 = vmatpush1.bf16.msra.mxu0 %v887
    %1108 = vmatprep.subr.bf16.mxu0 %v892
    %1109 = vmatpush1.bf16.msra.mxu0 %v891
    %1110 = vmatprep.subr.bf16.mxu0 %v896
    %1111 = vmatpush1.bf16.msra.mxu0 %v895
    %1112 = vmatprep.subr.bf16.mxu0 %v900
    %1113 = vmatpush1.bf16.msra.mxu0 %v899
    %1114 = vmatprep.subr.bf16.mxu0 %v904
    %1115 = vmatpush1.bf16.msra.mxu0 %v903
    %1116 = vmatprep.subr.bf16.mxu0 %v908
    %1117 = vmatpush1.bf16.msra.mxu0 %v907
    %1118 = vmatprep.subr.bf16.mxu0 %v912
    %1119 = vmatpush1.bf16.msra.mxu0 %v911
    %1120 = vmatprep.subr.bf16.mxu0 %v916
    %1121 = vmatpush1.bf16.msra.mxu0 %v915
    %1122 = vmatprep.subr.bf16.mxu0 %v920
    %1123 = vmatpush1.bf16.msra.mxu0 %v919
    %1124 = vmatprep.mubr.bf16.mxu0 %v406
    %1125 = vmatmul.mubr.bf16.gmra.mrb[0].mxu0 %v405
    %v1126 = vpop.f32.mrb[0].mxu0
    %v1127 = vadd.f32 %v1086, %v1126
    %v1128 = vpop.f32.mrb[0].mxu0
    %v1129 = vadd.f32 %v1088, %v1128
    %v1130 = vpop.f32.mrb[0].mxu0
    %v1131 = vpop.f32.mrb[0].mxu0
    %1132 = vdwg.mxu0
    %1133 = vmatprep.subr.bf16.mxu0 %v798
    %1134 = vmatpush1.bf16.msra.mxu0 %v797
    %1135 = vmatprep.subr.bf16.mxu0 %v802
    %1136 = vmatpush1.bf16.msra.mxu0 %v801
    %1137 = vmatprep.subr.bf16.mxu0 %v806
    %1138 = vmatpush1.bf16.msra.mxu0 %v805
    %1139 = vmatprep.subr.bf16.mxu0 %v810
    %1140 = vmatpush1.bf16.msra.mxu0 %v809
    %1141 = vmatprep.subr.bf16.mxu0 %v814
    %1142 = vmatpush1.bf16.msra.mxu0 %v813
    %1143 = vmatprep.subr.bf16.mxu0 %v818
    %1144 = vmatpush1.bf16.msra.mxu0 %v817
    %1145 = vmatprep.subr.bf16.mxu0 %v822
    %1146 = vmatpush1.bf16.msra.mxu0 %v821
    %1147 = vmatprep.subr.bf16.mxu0 %v826
    %1148 = vmatpush1.bf16.msra.mxu0 %v825
    %1149 = vmatprep.subr.bf16.mxu0 %v830
    %1150 = vmatpush1.bf16.msra.mxu0 %v829
    %1151 = vmatprep.subr.bf16.mxu0 %v834
    %1152 = vmatpush1.bf16.msra.mxu0 %v833
    %1153 = vmatprep.subr.bf16.mxu0 %v838
    %1154 = vmatpush1.bf16.msra.mxu0 %v837
    %1155 = vmatprep.subr.bf16.mxu0 %v842
    %1156 = vmatpush1.bf16.msra.mxu0 %v841
    %1157 = vmatprep.subr.bf16.mxu0 %v846
    %1158 = vmatpush1.bf16.msra.mxu0 %v845
    %1159 = vmatprep.subr.bf16.mxu0 %v850
    %1160 = vmatpush1.bf16.msra.mxu0 %v849
    %1161 = vmatprep.subr.bf16.mxu0 %v854
    %1162 = vmatpush1.bf16.msra.mxu0 %v853
    %1163 = vmatprep.subr.bf16.mxu0 %v858
    %1164 = vmatpush1.bf16.msra.mxu0 %v857
    %1165 = vmatprep.mubr.bf16.mxu0 %v404
    %1166 = vmatmul.mubr.bf16.gmra.mrb[0].mxu0 %v403
    %v1167 = vpop.f32.mrb[0].mxu0
    %v1168 = vadd.f32 %v388, %v1167
    %v1169 = vpop.f32.mrb[0].mxu0
    %v1170 = vadd.f32 %v392, %v1169
    %v1171 = vpop.f32.mrb[0].mxu0
    %v1172 = vpop.f32.mrb[0].mxu0
    %1173 = vdwg.mxu0
    %1174 = vmatprep.subr.bf16.mxu0 %v862
    %1175 = vmatpush1.bf16.msra.mxu0 %v861
    %1176 = vmatprep.subr.bf16.mxu0 %v866
    %1177 = vmatpush1.bf16.msra.mxu0 %v865
    %1178 = vmatprep.subr.bf16.mxu0 %v870
    %1179 = vmatpush1.bf16.msra.mxu0 %v869
    %1180 = vmatprep.subr.bf16.mxu0 %v874
    %1181 = vmatpush1.bf16.msra.mxu0 %v873
    %1182 = vmatprep.subr.bf16.mxu0 %v878
    %1183 = vmatpush1.bf16.msra.mxu0 %v877
    %1184 = vmatprep.subr.bf16.mxu0 %v882
    %1185 = vmatpush1.bf16.msra.mxu0 %v881
    %1186 = vmatprep.subr.bf16.mxu0 %v886
    %1187 = vmatpush1.bf16.msra.mxu0 %v885
    %1188 = vmatprep.subr.bf16.mxu0 %v890
    %1189 = vmatpush1.bf16.msra.mxu0 %v889
    %1190 = vmatprep.subr.bf16.mxu0 %v894
    %1191 = vmatpush1.bf16.msra.mxu0 %v893
    %1192 = vmatprep.subr.bf16.mxu0 %v898
    %1193 = vmatpush1.bf16.msra.mxu0 %v897
    %1194 = vmatprep.subr.bf16.mxu0 %v902
    %1195 = vmatpush1.bf16.msra.mxu0 %v901
    %1196 = vmatprep.subr.bf16.mxu0 %v906
    %1197 = vmatpush1.bf16.msra.mxu0 %v905
    %1198 = vmatprep.subr.bf16.mxu0 %v910
    %1199 = vmatpush1.bf16.msra.mxu0 %v909
    %1200 = vmatprep.subr.bf16.mxu0 %v914
    %1201 = vmatpush1.bf16.msra.mxu0 %v913
    %1202 = vmatprep.subr.bf16.mxu0 %v918
    %1203 = vmatpush1.bf16.msra.mxu0 %v917
    %1204 = vmatprep.subr.bf16.mxu0 %v922
    %1205 = vmatpush1.bf16.msra.mxu0 %v921
    %1206 = vmatprep.mubr.bf16.mxu0 %v406
    %1207 = vmatmul.mubr.bf16.gmra.mrb[0].mxu0 %v405
    %v1208 = vpop.f32.mrb[0].mxu0
    %v1209 = vadd.f32 %v1168, %v1208
    %v1210 = vpop.f32.mrb[0].mxu0
    %v1211 = vadd.f32 %v1170, %v1210
    %v1212 = vpop.f32.mrb[0].mxu0
    %v1213 = vpop.f32.mrb[0].mxu0
    %1214 = vdwg.mxu0
    %v1215 = vmax.f32 %v1127, 0.0
    %v1216 = vmax.f32 %v1129, 0.0
    %v1217 = vmax.f32 %v199, 0.0
    %v1218 = vmax.f32 %v242, 0.0
    %v1219 = vadd.f32 %v1209, %v201
    %v1220 = vadd.f32 %v1211, %v240
    %v1221 = vmax.f32 %v1219, 0.0
    %v1222 = vmax.f32 %v1220, 0.0
    %v1223 = vld [vmem:[%s4 + $0x10] sm:$0xff]
    %v1224 = vld [vmem:[%s4 + $0x28] sm:$0xff]
    %v1225 = vld [vmem:[%s4 + $0x40] sm:$0xff]
    %v1226 = vld [vmem:[%s4 + $0x58] sm:$0xff]
    %v1227 = vld [vmem:[%s4 + $0x70] sm:$0xff]
    %v1228 = vld [vmem:[%s4 + $0x88] sm:$0xff]
    %v1229 = vld [vmem:[%s4 + $0xa0] sm:$0xff]
    %v1230 = vld [vmem:[%s4 + $0xb8] sm:$0xff]
    %v1231 = vld [vmem:[%s4 + $0xd0] sm:$0xff]
    %v1232 = vld [vmem:[%s4 + $0xe8] sm:$0xff]
    %v1233 = vld [vmem:[%s4 + $0x100] sm:$0xff]
    %v1234 = vld [vmem:[%s4 + $0x118] sm:$0xff]
    %v1235 = vld [vmem:[%s4 + $0x130] sm:$0xff]
    %v1236 = vld [vmem:[%s4 + $0x148] sm:$0xff]
    %v1237 = vld [vmem:[%s4 + $0x160] sm:$0xff]
    %v1238 = vld [vmem:[%s4 + $0x178] sm:$0xff]
    %v1239 = vpack.c.bf16 %v1217, %v1215
    %v1240 = vpack.c.bf16 %v1218, %v1216
    %s1241 = scalar_lea.vmem %s8, 2
    %v1242 = vld [vmem:[%s1241] ss:$8 sm:$0x3]
    %v1244 = vlaneseq
    %v1245 = vshrl.u32 %v1244, 7
    %v1246 = vsub.s32 0, %v1245
    %v1247 = vrot.slane %v1242, %v1246
    %v1248 = vlaneseq
    %v1249 = vshrl.u32 %v1248, 7
    %v1250 = vsub.s32 1, %v1249
    %v1251 = vrot.slane %v1242, %v1250
    %v1270 = vunpack.c.l.b16 %v1223
    %v1271 = vunpack.c.h.b16 %v1223
    %v1272 = vunpack.c.l.b16 %v1224
    %v1273 = vunpack.c.h.b16 %v1224
    %v1274 = vunpack.c.l.b16 %v1225
    %v1275 = vunpack.c.h.b16 %v1225
    %v1276 = vunpack.c.l.b16 %v1226
    %v1277 = vunpack.c.h.b16 %v1226
    %v1278 = vunpack.c.l.b16 %v1227
    %v1279 = vunpack.c.h.b16 %v1227
    %v1280 = vunpack.c.l.b16 %v1228
    %v1281 = vunpack.c.h.b16 %v1228
    %v1282 = vunpack.c.l.b16 %v1229
    %v1283 = vunpack.c.h.b16 %v1229
    %v1284 = vunpack.c.l.b16 %v1230
    %v1285 = vunpack.c.h.b16 %v1230
    %v1286 = vunpack.c.l.b16 %v1231
    %v1287 = vunpack.c.h.b16 %v1231
    %v1288 = vunpack.c.l.b16 %v1232
    %v1289 = vunpack.c.h.b16 %v1232
    %v1290 = vunpack.c.l.b16 %v1233
    %v1291 = vunpack.c.h.b16 %v1233
    %v1292 = vunpack.c.l.b16 %v1234
    %v1293 = vunpack.c.h.b16 %v1234
    %v1294 = vunpack.c.l.b16 %v1235
    %v1295 = vunpack.c.h.b16 %v1235
    %v1296 = vunpack.c.l.b16 %v1236
    %v1297 = vunpack.c.h.b16 %v1236
    %v1298 = vunpack.c.l.b16 %v1237
    %v1299 = vunpack.c.h.b16 %v1237
    %v1300 = vunpack.c.l.b16 %v1238
    %v1301 = vunpack.c.h.b16 %v1238
    %v1302 = vpack.c.b16 %v1272, %v1270
    %v1303 = vpack.c.b16 %v1273, %v1271
    %v1304 = vpack.c.b16 %v1276, %v1274
    %v1305 = vpack.c.b16 %v1277, %v1275
    %v1306 = vpack.c.b16 %v1280, %v1278
    %v1307 = vpack.c.b16 %v1281, %v1279
    %v1308 = vpack.c.b16 %v1284, %v1282
    %v1309 = vpack.c.b16 %v1285, %v1283
    %v1310 = vpack.c.b16 %v1288, %v1286
    %v1311 = vpack.c.b16 %v1289, %v1287
    %v1312 = vpack.c.b16 %v1292, %v1290
    %v1313 = vpack.c.b16 %v1293, %v1291
    %v1314 = vpack.c.b16 %v1296, %v1294
    %v1315 = vpack.c.b16 %v1297, %v1295
    %v1316 = vpack.c.b16 %v1300, %v1298
    %v1317 = vpack.c.b16 %v1301, %v1299
    %1334 = vmatprep.subr.bf16.mxu0 %v1303
    %1335 = vmatpush1.bf16.msra.mxu0 %v1302
    %1336 = vmatprep.subr.bf16.mxu0 %v1305
    %1337 = vmatpush1.bf16.msra.mxu0 %v1304
    %1338 = vmatprep.subr.bf16.mxu0 %v1307
    %1339 = vmatpush1.bf16.msra.mxu0 %v1306
    %1340 = vmatprep.subr.bf16.mxu0 %v1309
    %1341 = vmatpush1.bf16.msra.mxu0 %v1308
    %1342 = vmatprep.subr.bf16.mxu0 %v1311
    %1343 = vmatpush1.bf16.msra.mxu0 %v1310
    %1344 = vmatprep.subr.bf16.mxu0 %v1313
    %1345 = vmatpush1.bf16.msra.mxu0 %v1312
    %1346 = vmatprep.subr.bf16.mxu0 %v1315
    %1347 = vmatpush1.bf16.msra.mxu0 %v1314
    %1348 = vmatprep.subr.bf16.mxu0 %v1317
    %1349 = vmatpush1.bf16.msra.mxu0 %v1316
    %1350 = vmatprep.subr.bf16.mxu0 0
    %1351 = vmatpush1.bf16.msra.mxu0 0
    %1352 = vmatprep.subr.bf16.mxu0 0
    %1353 = vmatpush1.bf16.msra.mxu0 0
    %1354 = vmatprep.subr.bf16.mxu0 0
    %1355 = vmatpush1.bf16.msra.mxu0 0
    %1356 = vmatprep.subr.bf16.mxu0 0
    %1357 = vmatpush1.bf16.msra.mxu0 0
    %1358 = vmatprep.subr.bf16.mxu0 0
    %1359 = vmatpush1.bf16.msra.mxu0 0
    %1360 = vmatprep.subr.bf16.mxu0 0
    %1361 = vmatpush1.bf16.msra.mxu0 0
    %1362 = vmatprep.subr.bf16.mxu0 0
    %1363 = vmatpush1.bf16.msra.mxu0 0
    %1364 = vmatprep.subr.bf16.mxu0 0
    %1365 = vmatpush1.bf16.msra.mxu0 0
    %1366 = vmatprep.mubr.bf16.mxu0 0
    %1367 = vmatmul.mubr.bf16.gmra.mrb[0].mxu0 %v1239
    %v1368 = vpop.f32.mrb[0].mxu0
    %v1369 = vadd.f32 %v1247, %v1368
    %v1370 = vpop.f32.mrb[0].mxu0
    %v1371 = vadd.f32 %v1251, %v1370
    %v1372 = vpop.f32.mrb[0].mxu0
    %v1373 = vadd.f32 %v1247, %v1372
    %v1374 = vpop.f32.mrb[0].mxu0
    %v1375 = vadd.f32 %v1251, %v1374
    %1376 = vmatprep.mubr.bf16.mxu0 0
    %1377 = vmatmul.mubr.bf16.gmra.mrb[0].mxu0 %v1240
    %v1378 = vpop.f32.mrb[0].mxu0
    %v1379 = vadd.f32 %v1247, %v1378
    %v1380 = vpop.f32.mrb[0].mxu0
    %v1381 = vadd.f32 %v1251, %v1380
    %v1382 = vpop.f32.mrb[0].mxu0
    %v1383 = vadd.f32 %v1247, %v1382
    %v1384 = vpop.f32.mrb[0].mxu0
    %v1385 = vadd.f32 %v1251, %v1384
    %1386 = vdwg.mxu0
    %v1387 = vmax.f32 %v1369, 0.0
    %v1388 = vmax.f32 %v1371, 0.0
    %v1389 = vmax.f32 %v1373, 0.0
    %v1390 = vmax.f32 %v1375, 0.0
    %v1391 = vmax.f32 %v1379, 0.0
    %v1392 = vmax.f32 %v1381, 0.0
    %v1393 = vmax.f32 %v1383, 0.0
    %v1394 = vmax.f32 %v1385, 0.0
    %v1395 = vld [vmem:[%s6 + $0x14] sm:$0xf]
    %v1396 = vld [vmem:[%s6 + $0x2c] sm:$0xf]
    %v1397 = vld [vmem:[%s6 + $0x44] sm:$0xf]
    %v1398 = vld [vmem:[%s6 + $0x5c] sm:$0xf]
    %v1399 = vld [vmem:[%s6 + $0x74] sm:$0xf]
    %v1400 = vld [vmem:[%s6 + $0x8c] sm:$0xf]
    %v1401 = vld [vmem:[%s6 + $0xa4] sm:$0xf]
    %v1402 = vld [vmem:[%s6 + $0xbc] sm:$0xf]
    %v1403 = vld [vmem:[%s6 + $0xd4] sm:$0xf]
    %v1404 = vld [vmem:[%s6 + $0xec] sm:$0xf]
    %v1405 = vld [vmem:[%s6 + $0x104] sm:$0xf]
    %v1406 = vld [vmem:[%s6 + $0x11c] sm:$0xf]
    %v1407 = vld [vmem:[%s6 + $0x134] sm:$0xf]
    %v1408 = vld [vmem:[%s6 + $0x14c] sm:$0xf]
    %v1409 = vld [vmem:[%s6 + $0x164] sm:$0xf]
    %v1410 = vld [vmem:[%s6 + $0x17c] sm:$0xf]
    %v1411 = vld [vmem:[%s6 + $0x194] sm:$0xf]
    %v1412 = vld [vmem:[%s6 + $0x1ac] sm:$0xf]
    %v1413 = vld [vmem:[%s6 + $0x1c4] sm:$0xf]
    %v1414 = vld [vmem:[%s6 + $0x1dc] sm:$0xf]
    %v1415 = vld [vmem:[%s6 + $0x1f4] sm:$0xf]
    %v1416 = vld [vmem:[%s6 + $0x20c] sm:$0xf]
    %v1417 = vld [vmem:[%s6 + $0x224] sm:$0xf]
    %v1418 = vld [vmem:[%s6 + $0x23c] sm:$0xf]
    %v1419 = vld [vmem:[%s6 + $0x254] sm:$0xf]
    %v1420 = vld [vmem:[%s6 + $0x26c] sm:$0xf]
    %v1421 = vld [vmem:[%s6 + $0x284] sm:$0xf]
    %v1422 = vld [vmem:[%s6 + $0x29c] sm:$0xf]
    %v1423 = vld [vmem:[%s6 + $0x2b4] sm:$0xf]
    %v1424 = vld [vmem:[%s6 + $0x2cc] sm:$0xf]
    %v1425 = vld [vmem:[%s6 + $0x2e4] sm:$0xf]
    %v1426 = vld [vmem:[%s6 + $0x2fc] sm:$0xf]
    %v1427 = vpack.c.bf16 %v1221, %v1221
    %v1428 = vpack.c.bf16 %v1222, %v1222
    %v1429 = vld [vmem:[%s8 + $0x3] ss:$0 sm:$0xff]
    %v1462 = vunpack.c.l.b16 %v1395
    %v1463 = vunpack.c.l.b16 %v1396
    %v1464 = vunpack.c.l.b16 %v1397
    %v1465 = vunpack.c.l.b16 %v1398
    %v1466 = vunpack.c.l.b16 %v1399
    %v1467 = vunpack.c.l.b16 %v1400
    %v1468 = vunpack.c.l.b16 %v1401
    %v1469 = vunpack.c.l.b16 %v1402
    %v1470 = vunpack.c.l.b16 %v1403
    %v1471 = vunpack.c.l.b16 %v1404
    %v1472 = vunpack.c.l.b16 %v1405
    %v1473 = vunpack.c.l.b16 %v1406
    %v1474 = vunpack.c.l.b16 %v1407
    %v1475 = vunpack.c.l.b16 %v1408
    %v1476 = vunpack.c.l.b16 %v1409
    %v1477 = vunpack.c.l.b16 %v1410
    %v1478 = vunpack.c.l.b16 %v1411
    %v1479 = vunpack.c.l.b16 %v1412
    %v1480 = vunpack.c.l.b16 %v1413
    %v1481 = vunpack.c.l.b16 %v1414
    %v1482 = vunpack.c.l.b16 %v1415
    %v1483 = vunpack.c.l.b16 %v1416
    %v1484 = vunpack.c.l.b16 %v1417
    %v1485 = vunpack.c.l.b16 %v1418
    %v1486 = vunpack.c.l.b16 %v1419
    %v1487 = vunpack.c.l.b16 %v1420
    %v1488 = vunpack.c.l.b16 %v1421
    %v1489 = vunpack.c.l.b16 %v1422
    %v1490 = vunpack.c.l.b16 %v1423
    %v1491 = vunpack.c.l.b16 %v1424
    %v1492 = vunpack.c.l.b16 %v1425
    %v1493 = vunpack.c.l.b16 %v1426
    %v1494 = vpack.c.b16 %v1463, %v1462
    %v1495 = vpack.c.b16 %v1465, %v1464
    %v1496 = vpack.c.b16 %v1467, %v1466
    %v1497 = vpack.c.b16 %v1469, %v1468
    %v1498 = vpack.c.b16 %v1471, %v1470
    %v1499 = vpack.c.b16 %v1473, %v1472
    %v1500 = vpack.c.b16 %v1475, %v1474
    %v1501 = vpack.c.b16 %v1477, %v1476
    %v1502 = vpack.c.b16 %v1479, %v1478
    %v1503 = vpack.c.b16 %v1481, %v1480
    %v1504 = vpack.c.b16 %v1483, %v1482
    %v1505 = vpack.c.b16 %v1485, %v1484
    %v1506 = vpack.c.b16 %v1487, %v1486
    %v1507 = vpack.c.b16 %v1489, %v1488
    %v1508 = vpack.c.b16 %v1491, %v1490
    %v1509 = vpack.c.b16 %v1493, %v1492
    %1526 = vmatprep.subr.bf16.mxu0 0
    %1527 = vmatpush1.bf16.msra.mxu0 %v1494
    %1528 = vmatprep.subr.bf16.mxu0 0
    %1529 = vmatpush1.bf16.msra.mxu0 %v1495
    %1530 = vmatprep.subr.bf16.mxu0 0
    %1531 = vmatpush1.bf16.msra.mxu0 %v1496
    %1532 = vmatprep.subr.bf16.mxu0 0
    %1533 = vmatpush1.bf16.msra.mxu0 %v1497
    %1534 = vmatprep.subr.bf16.mxu0 0
    %1535 = vmatpush1.bf16.msra.mxu0 %v1498
    %1536 = vmatprep.subr.bf16.mxu0 0
    %1537 = vmatpush1.bf16.msra.mxu0 %v1499
    %1538 = vmatprep.subr.bf16.mxu0 0
    %1539 = vmatpush1.bf16.msra.mxu0 %v1500
    %1540 = vmatprep.subr.bf16.mxu0 0
    %1541 = vmatpush1.bf16.msra.mxu0 %v1501
    %1542 = vmatprep.subr.bf16.mxu0 0
    %1543 = vmatpush1.bf16.msra.mxu0 %v1502
    %1544 = vmatprep.subr.bf16.mxu0 0
    %1545 = vmatpush1.bf16.msra.mxu0 %v1503
    %1546 = vmatprep.subr.bf16.mxu0 0
    %1547 = vmatpush1.bf16.msra.mxu0 %v1504
    %1548 = vmatprep.subr.bf16.mxu0 0
    %1549 = vmatpush1.bf16.msra.mxu0 %v1505
    %1550 = vmatprep.subr.bf16.mxu0 0
    %1551 = vmatpush1.bf16.msra.mxu0 %v1506
    %1552 = vmatprep.subr.bf16.mxu0 0
    %1553 = vmatpush1.bf16.msra.mxu0 %v1507
    %1554 = vmatprep.subr.bf16.mxu0 0
    %1555 = vmatpush1.bf16.msra.mxu0 %v1508
    %1556 = vmatprep.subr.bf16.mxu0 0
    %1557 = vmatpush1.bf16.msra.mxu0 %v1509
    %1558 = vmatprep.mubr.bf16.mxu0 %v1428
    %1559 = vmatmul.mubr.bf16.gmra.mrb[0].mxu0 %v1427
    %v1560 = vpop.f32.mrb[0].mxu0
    %v1561 = vadd.f32 %v1429, %v1560
    %v1562 = vpop.f32.mrb[0].mxu0
    %v1563 = vpop.f32.mrb[0].mxu0
    %v1564 = vpop.f32.mrb[0].mxu0
    %1565 = vdwg.mxu0
    %v1566 = vmax.f32 %v1561, 0.0
    %v1567 = vld [vmem:[#allocation7] sm:$0xf]
    %v1568 = vld [vmem:[#allocation7 + $0x4] sm:$0xf]
    %v1569 = vld [vmem:[#allocation7 + $0x8] sm:$0xf]
    %v1570 = vld [vmem:[#allocation7 + $0xc] sm:$0xf]
    %v1571 = vld [vmem:[#allocation7 + $0x10] sm:$0xf]
    %v1572 = vld [vmem:[#allocation7 + $0x14] sm:$0xf]
    %v1573 = vld [vmem:[#allocation7 + $0x18] sm:$0xf]
    %v1574 = vld [vmem:[#allocation7 + $0x1c] sm:$0xf]
    %v1575 = vld [vmem:[#allocation7 + $0x20] sm:$0xf]
    %v1576 = vld [vmem:[#allocation7 + $0x24] sm:$0xf]
    %v1577 = vld [vmem:[#allocation7 + $0x28] sm:$0xf]
    %v1578 = vld [vmem:[#allocation7 + $0x2c] sm:$0xf]
    %v1579 = vld [vmem:[#allocation7 + $0x30] sm:$0xf]
    %v1580 = vld [vmem:[#allocation7 + $0x34] sm:$0xf]
    %v1581 = vld [vmem:[#allocation7 + $0x38] sm:$0xf]
    %v1582 = vld [vmem:[#allocation7 + $0x3c] sm:$0xf]
    %v1583 = vld [vmem:[#allocation7 + $0x40] sm:$0xf]
    %v1584 = vld [vmem:[#allocation7 + $0x44] sm:$0xf]
    %v1585 = vld [vmem:[#allocation7 + $0x48] sm:$0xf]
    %v1586 = vld [vmem:[#allocation7 + $0x4c] sm:$0xf]
    %v1587 = vld [vmem:[#allocation7 + $0x50] sm:$0xf]
    %v1588 = vld [vmem:[#allocation7 + $0x54] sm:$0xf]
    %v1589 = vld [vmem:[#allocation7 + $0x58] sm:$0xf]
    %v1590 = vld [vmem:[#allocation7 + $0x5c] sm:$0xf]
    %v1591 = vld [vmem:[#allocation7 + $0x60] sm:$0xf]
    %v1592 = vld [vmem:[#allocation7 + $0x64] sm:$0xf]
    %v1593 = vld [vmem:[#allocation7 + $0x68] sm:$0xf]
    %v1594 = vld [vmem:[#allocation7 + $0x6c] sm:$0xf]
    %v1595 = vld [vmem:[#allocation7 + $0x70] sm:$0xf]
    %v1596 = vld [vmem:[#allocation7 + $0x74] sm:$0xf]
    %v1597 = vld [vmem:[#allocation7 + $0x78] sm:$0xf]
    %v1598 = vld [vmem:[#allocation7 + $0x7c] sm:$0xf]
    %v1599 = vpack.c.bf16 %v1389, %v1387
    %v1600 = vpack.c.bf16 %v1390, %v1388
    %v1601 = vpack.c.bf16 %v1393, %v1391
    %v1602 = vpack.c.bf16 %v1394, %v1392
    %v1603 = vld [vmem:[%s8 + $0x4] ss:$0 sm:$0xff]
    %v1636 = vunpack.c.l.b16 %v1567
    %v1637 = vunpack.c.l.b16 %v1568
    %v1638 = vunpack.c.l.b16 %v1569
    %v1639 = vunpack.c.l.b16 %v1570
    %v1640 = vunpack.c.l.b16 %v1571
    %v1641 = vunpack.c.l.b16 %v1572
    %v1642 = vunpack.c.l.b16 %v1573
    %v1643 = vunpack.c.l.b16 %v1574
    %v1644 = vunpack.c.l.b16 %v1575
    %v1645 = vunpack.c.l.b16 %v1576
    %v1646 = vunpack.c.l.b16 %v1577
    %v1647 = vunpack.c.l.b16 %v1578
    %v1648 = vunpack.c.l.b16 %v1579
    %v1649 = vunpack.c.l.b16 %v1580
    %v1650 = vunpack.c.l.b16 %v1581
    %v1651 = vunpack.c.l.b16 %v1582
    %v1652 = vunpack.c.l.b16 %v1583
    %v1653 = vunpack.c.l.b16 %v1584
    %v1654 = vunpack.c.l.b16 %v1585
    %v1655 = vunpack.c.l.b16 %v1586
    %v1656 = vunpack.c.l.b16 %v1587
    %v1657 = vunpack.c.l.b16 %v1588
    %v1658 = vunpack.c.l.b16 %v1589
    %v1659 = vunpack.c.l.b16 %v1590
    %v1660 = vunpack.c.l.b16 %v1591
    %v1661 = vunpack.c.l.b16 %v1592
    %v1662 = vunpack.c.l.b16 %v1593
    %v1663 = vunpack.c.l.b16 %v1594
    %v1664 = vunpack.c.l.b16 %v1595
    %v1665 = vunpack.c.l.b16 %v1596
    %v1666 = vunpack.c.l.b16 %v1597
    %v1667 = vunpack.c.l.b16 %v1598
    %v1668 = vpack.c.b16 %v1637, %v1636
    %v1669 = vpack.c.b16 %v1639, %v1638
    %v1670 = vpack.c.b16 %v1641, %v1640
    %v1671 = vpack.c.b16 %v1643, %v1642
    %v1672 = vpack.c.b16 %v1645, %v1644
    %v1673 = vpack.c.b16 %v1647, %v1646
    %v1674 = vpack.c.b16 %v1649, %v1648
    %v1675 = vpack.c.b16 %v1651, %v1650
    %v1676 = vpack.c.b16 %v1653, %v1652
    %v1677 = vpack.c.b16 %v1655, %v1654
    %v1678 = vpack.c.b16 %v1657, %v1656
    %v1679 = vpack.c.b16 %v1659, %v1658
    %v1680 = vpack.c.b16 %v1661, %v1660
    %v1681 = vpack.c.b16 %v1663, %v1662
    %v1682 = vpack.c.b16 %v1665, %v1664
    %v1683 = vpack.c.b16 %v1667, %v1666
    %1700 = vmatprep.subr.bf16.mxu0 0
    %1701 = vmatpush1.bf16.msra.mxu0 %v1668
    %1702 = vmatprep.subr.bf16.mxu0 0
    %1703 = vmatpush1.bf16.msra.mxu0 %v1669
    %1704 = vmatprep.subr.bf16.mxu0 0
    %1705 = vmatpush1.bf16.msra.mxu0 %v1670
    %1706 = vmatprep.subr.bf16.mxu0 0
    %1707 = vmatpush1.bf16.msra.mxu0 %v1671
    %1708 = vmatprep.subr.bf16.mxu0 0
    %1709 = vmatpush1.bf16.msra.mxu0 %v1672
    %1710 = vmatprep.subr.bf16.mxu0 0
    %1711 = vmatpush1.bf16.msra.mxu0 %v1673
    %1712 = vmatprep.subr.bf16.mxu0 0
    %1713 = vmatpush1.bf16.msra.mxu0 %v1674
    %1714 = vmatprep.subr.bf16.mxu0 0
    %1715 = vmatpush1.bf16.msra.mxu0 %v1675
    %1716 = vmatprep.subr.bf16.mxu0 0
    %1717 = vmatpush1.bf16.msra.mxu0 %v1676
    %1718 = vmatprep.subr.bf16.mxu0 0
    %1719 = vmatpush1.bf16.msra.mxu0 %v1677
    %1720 = vmatprep.subr.bf16.mxu0 0
    %1721 = vmatpush1.bf16.msra.mxu0 %v1678
    %1722 = vmatprep.subr.bf16.mxu0 0
    %1723 = vmatpush1.bf16.msra.mxu0 %v1679
    %1724 = vmatprep.subr.bf16.mxu0 0
    %1725 = vmatpush1.bf16.msra.mxu0 %v1680
    %1726 = vmatprep.subr.bf16.mxu0 0
    %1727 = vmatpush1.bf16.msra.mxu0 %v1681
    %1728 = vmatprep.subr.bf16.mxu0 0
    %1729 = vmatpush1.bf16.msra.mxu0 %v1682
    %1730 = vmatprep.subr.bf16.mxu0 0
    %1731 = vmatpush1.bf16.msra.mxu0 %v1683
    %1732 = vmatprep.mubr.bf16.mxu0 %v1600
    %1733 = vmatmul.mubr.bf16.gmra.mrb[0].mxu0 %v1599
    %v1734 = vpop.f32.mrb[0].mxu0
    %v1735 = vadd.f32 %v1603, %v1734
    %v1736 = vpop.f32.mrb[0].mxu0
    %v1737 = vpop.f32.mrb[0].mxu0
    %v1738 = vadd.f32 %v1603, %v1737
    %v1739 = vpop.f32.mrb[0].mxu0
    %1740 = vmatprep.mubr.bf16.mxu0 %v1602
    %1741 = vmatmul.mubr.bf16.gmra.mrb[0].mxu0 %v1601
    %v1742 = vpop.f32.mrb[0].mxu0
    %v1743 = vadd.f32 %v1603, %v1742
    %v1744 = vpop.f32.mrb[0].mxu0
    %v1745 = vpop.f32.mrb[0].mxu0
    %v1746 = vadd.f32 %v1603, %v1745
    %v1747 = vpop.f32.mrb[0].mxu0
    %1748 = vdwg.mxu0
    %v1749 = vld [vmem:[#allocation8 + $0x8] sm:$0xf]
    %v1750 = vld [vmem:[#allocation8 + $0x14] sm:$0xf]
    %v1751 = vld [vmem:[#allocation8 + $0x20] sm:$0xf]
    %v1752 = vld [vmem:[#allocation8 + $0x2c] sm:$0xf]
    %v1753 = vld [vmem:[#allocation8 + $0x38] sm:$0xf]
    %v1754 = vld [vmem:[#allocation8 + $0x44] sm:$0xf]
    %v1755 = vld [vmem:[#allocation8 + $0x50] sm:$0xf]
    %v1756 = vld [vmem:[#allocation8 + $0x5c] sm:$0xf]
    %v1757 = vpack.c.bf16 %v1566, %v1566
    %v1758 = vld [vmem:[%s8 + $0x5] ss:$0 sm:$0xff]
    %v1767 = vunpack.c.l.b16 %v1749
    %v1768 = vunpack.c.l.b16 %v1750
    %v1769 = vunpack.c.l.b16 %v1751
    %v1770 = vunpack.c.l.b16 %v1752
    %v1771 = vunpack.c.l.b16 %v1753
    %v1772 = vunpack.c.l.b16 %v1754
    %v1773 = vunpack.c.l.b16 %v1755
    %v1774 = vunpack.c.l.b16 %v1756
    %v1775 = vpack.c.b16 %v1768, %v1767
    %v1776 = vpack.c.b16 %v1770, %v1769
    %v1777 = vpack.c.b16 %v1772, %v1771
    %v1778 = vpack.c.b16 %v1774, %v1773
    %vm1783 = vcmask 523264
    %v1785 = vsel %vm1783, %v1757, 0
    %1787 = vmatprep.subr.bf16.mxu0 0
    %1788 = vmatpush1.bf16.msra.mxu0 %v1775
    %1789 = vmatprep.subr.bf16.mxu0 0
    %1790 = vmatpush1.bf16.msra.mxu0 %v1776
    %1791 = vmatprep.subr.bf16.mxu0 0
    %1792 = vmatpush1.bf16.msra.mxu0 %v1777
    %1793 = vmatprep.subr.bf16.mxu0 0
    %1794 = vmatpush1.bf16.msra.mxu0 %v1778
    %1795 = vmatprep.subr.bf16.mxu0 0
    %1796 = vmatpush1.bf16.msra.mxu0 0
    %1797 = vmatprep.subr.bf16.mxu0 0
    %1798 = vmatpush1.bf16.msra.mxu0 0
    %1799 = vmatprep.subr.bf16.mxu0 0
    %1800 = vmatpush1.bf16.msra.mxu0 0
    %1801 = vmatprep.subr.bf16.mxu0 0
    %1802 = vmatpush1.bf16.msra.mxu0 0
    %1803 = vmatprep.subr.bf16.mxu0 0
    %1804 = vmatpush1.bf16.msra.mxu0 0
    %1805 = vmatprep.subr.bf16.mxu0 0
    %1806 = vmatpush1.bf16.msra.mxu0 0
    %1807 = vmatprep.subr.bf16.mxu0 0
    %1808 = vmatpush1.bf16.msra.mxu0 0
    %1809 = vmatprep.subr.bf16.mxu0 0
    %1810 = vmatpush1.bf16.msra.mxu0 0
    %1811 = vmatprep.subr.bf16.mxu0 0
    %1812 = vmatpush1.bf16.msra.mxu0 0
    %1813 = vmatprep.subr.bf16.mxu0 0
    %1814 = vmatpush1.bf16.msra.mxu0 0
    %1815 = vmatprep.subr.bf16.mxu0 0
    %1816 = vmatpush1.bf16.msra.mxu0 0
    %1817 = vmatprep.subr.bf16.mxu0 0
    %1818 = vmatpush1.bf16.msra.mxu0 0
    %1819 = vmatprep.mubr.bf16.mxu0 0
    %1820 = vmatmul.mubr.bf16.gmra.mrb[0].mxu0 %v1785
    %v1821 = vpop.f32.mrb[0].mxu0
    %v1822 = vadd.f32 %v1758, %v1821
    %v1823 = vpop.f32.mrb[0].mxu0
    %v1824 = vpop.f32.mrb[0].mxu0
    %v1825 = vpop.f32.mrb[0].mxu0
    %1826 = vdwg.mxu0
    %v1827 = vsel %vm160, %v1738, %v1743
    %1829 = vrot.lane.b32.xlu0 %v1746, 96
    %v1830 = vpop.permute.xlu0 %1829
    %v1832 = vsel %vm160, %v1735, %v1830
    %v1833 = vld [vmem:[#allocation8] sm:$0xff]
    %v1834 = vld [vmem:[#allocation8 + $0xc] sm:$0xff]
    %v1835 = vld [vmem:[#allocation8 + $0x18] sm:$0xff]
    %v1836 = vld [vmem:[#allocation8 + $0x24] sm:$0xff]
    %v1837 = vld [vmem:[#allocation8 + $0x30] sm:$0xff]
    %v1838 = vld [vmem:[#allocation8 + $0x3c] sm:$0xff]
    %v1839 = vld [vmem:[#allocation8 + $0x48] sm:$0xff]
    %v1840 = vld [vmem:[#allocation8 + $0x54] sm:$0xff]
    %v1841 = vpack.c.bf16 %v1832, %v1827
    %s1842 = scalar_lea.vmem %s8, 6
    %v1843 = vld [vmem:[%s1842] ss:$8 sm:$0x3]
    %v1845 = vlaneseq
    %v1846 = vshrl.u32 %v1845, 7
    %v1847 = vsub.s32 0, %v1846
    %v1848 = vrot.slane %v1843, %v1847
    %v1849 = vlaneseq
    %v1850 = vshrl.u32 %v1849, 7
    %v1851 = vsub.s32 1, %v1850
    %v1852 = vrot.slane %v1843, %v1851
    %v1863 = vunpack.c.l.b16 %v1833
    %v1864 = vunpack.c.h.b16 %v1833
    %v1865 = vunpack.c.l.b16 %v1834
    %v1866 = vunpack.c.h.b16 %v1834
    %v1867 = vunpack.c.l.b16 %v1835
    %v1868 = vunpack.c.h.b16 %v1835
    %v1869 = vunpack.c.l.b16 %v1836
    %v1870 = vunpack.c.h.b16 %v1836
    %v1871 = vunpack.c.l.b16 %v1837
    %v1872 = vunpack.c.h.b16 %v1837
    %v1873 = vunpack.c.l.b16 %v1838
    %v1874 = vunpack.c.h.b16 %v1838
    %v1875 = vunpack.c.l.b16 %v1839
    %v1876 = vunpack.c.h.b16 %v1839
    %v1877 = vunpack.c.l.b16 %v1840
    %v1878 = vunpack.c.h.b16 %v1840
    %v1879 = vpack.c.b16 %v1865, %v1863
    %v1880 = vpack.c.b16 %v1866, %v1864
    %v1881 = vpack.c.b16 %v1869, %v1867
    %v1882 = vpack.c.b16 %v1870, %v1868
    %v1883 = vpack.c.b16 %v1873, %v1871
    %v1884 = vpack.c.b16 %v1874, %v1872
    %v1885 = vpack.c.b16 %v1877, %v1875
    %v1886 = vpack.c.b16 %v1878, %v1876
    %v1896 = vsel %vm1783, %v1841, 0
    %1898 = vmatprep.subr.bf16.mxu0 %v1880
    %1899 = vmatpush1.bf16.msra.mxu0 %v1879
    %1900 = vmatprep.subr.bf16.mxu0 %v1882
    %1901 = vmatpush1.bf16.msra.mxu0 %v1881
    %1902 = vmatprep.subr.bf16.mxu0 %v1884
    %1903 = vmatpush1.bf16.msra.mxu0 %v1883
    %1904 = vmatprep.subr.bf16.mxu0 %v1886
    %1905 = vmatpush1.bf16.msra.mxu0 %v1885
    %1906 = vmatprep.subr.bf16.mxu0 0
    %1907 = vmatpush1.bf16.msra.mxu0 0
    %1908 = vmatprep.subr.bf16.mxu0 0
    %1909 = vmatpush1.bf16.msra.mxu0 0
    %1910 = vmatprep.subr.bf16.mxu0 0
    %1911 = vmatpush1.bf16.msra.mxu0 0
    %1912 = vmatprep.subr.bf16.mxu0 0
    %1913 = vmatpush1.bf16.msra.mxu0 0
    %1914 = vmatprep.subr.bf16.mxu0 0
    %1915 = vmatpush1.bf16.msra.mxu0 0
    %1916 = vmatprep.subr.bf16.mxu0 0
    %1917 = vmatpush1.bf16.msra.mxu0 0
    %1918 = vmatprep.subr.bf16.mxu0 0
    %1919 = vmatpush1.bf16.msra.mxu0 0
    %1920 = vmatprep.subr.bf16.mxu0 0
    %1921 = vmatpush1.bf16.msra.mxu0 0
    %1922 = vmatprep.subr.bf16.mxu0 0
    %1923 = vmatpush1.bf16.msra.mxu0 0
    %1924 = vmatprep.subr.bf16.mxu0 0
    %1925 = vmatpush1.bf16.msra.mxu0 0
    %1926 = vmatprep.subr.bf16.mxu0 0
    %1927 = vmatpush1.bf16.msra.mxu0 0
    %1928 = vmatprep.subr.bf16.mxu0 0
    %1929 = vmatpush1.bf16.msra.mxu0 0
    %1930 = vmatprep.mubr.bf16.mxu0 0
    %1931 = vmatmul.mubr.bf16.gmra.mrb[0].mxu0 %v1896
    %v1932 = vpop.f32.mrb[0].mxu0
    %v1933 = vadd.f32 %v1848, %v1932
    %v1934 = vpop.f32.mrb[0].mxu0
    %v1935 = vpop.f32.mrb[0].mxu0
    %v1936 = vpop.f32.mrb[0].mxu0
    %v1937 = vadd.f32 %v1852, %v1936
    %1938 = vdwg.mxu0
    %v1939 = vmax.f32 %v1933, 0.0
    %v1940 = vmax.f32 %v1937, 0.0
    %v1941 = vld [vmem:[%s4] sm:$0xff]
    %v1942 = vld [vmem:[%s4 + $0x8] sm:$0xff]
    %v1943 = vld [vmem:[%s4 + $0x18] sm:$0xff]
    %v1944 = vld [vmem:[%s4 + $0x20] sm:$0xff]
    %v1945 = vld [vmem:[%s4 + $0x30] sm:$0xff]
    %v1946 = vld [vmem:[%s4 + $0x38] sm:$0xff]
    %v1947 = vld [vmem:[%s4 + $0x48] sm:$0xff]
    %v1948 = vld [vmem:[%s4 + $0x50] sm:$0xff]
    %v1949 = vld [vmem:[%s4 + $0x60] sm:$0xff]
    %v1950 = vld [vmem:[%s4 + $0x68] sm:$0xff]
    %v1951 = vld [vmem:[%s4 + $0x78] sm:$0xff]
    %v1952 = vld [vmem:[%s4 + $0x80] sm:$0xff]
    %v1953 = vld [vmem:[%s4 + $0x90] sm:$0xff]
    %v1954 = vld [vmem:[%s4 + $0x98] sm:$0xff]
    %v1955 = vld [vmem:[%s4 + $0xa8] sm:$0xff]
    %v1956 = vld [vmem:[%s4 + $0xb0] sm:$0xff]
    %v1957 = vld [vmem:[%s4 + $0xc0] sm:$0xff]
    %v1958 = vld [vmem:[%s4 + $0xc8] sm:$0xff]
    %v1959 = vld [vmem:[%s4 + $0xd8] sm:$0xff]
    %v1960 = vld [vmem:[%s4 + $0xe0] sm:$0xff]
    %v1961 = vld [vmem:[%s4 + $0xf0] sm:$0xff]
    %v1962 = vld [vmem:[%s4 + $0xf8] sm:$0xff]
    %v1963 = vld [vmem:[%s4 + $0x108] sm:$0xff]
    %v1964 = vld [vmem:[%s4 + $0x110] sm:$0xff]
    %v1965 = vld [vmem:[%s4 + $0x120] sm:$0xff]
    %v1966 = vld [vmem:[%s4 + $0x128] sm:$0xff]
    %v1967 = vld [vmem:[%s4 + $0x138] sm:$0xff]
    %v1968 = vld [vmem:[%s4 + $0x140] sm:$0xff]
    %v1969 = vld [vmem:[%s4 + $0x150] sm:$0xff]
    %v1970 = vld [vmem:[%s4 + $0x158] sm:$0xff]
    %v1971 = vld [vmem:[%s4 + $0x168] sm:$0xff]
    %v1972 = vld [vmem:[%s4 + $0x170] sm:$0xff]
    %v1973 = vpack.c.bf16 %v1940, %v1939
    %s1974 = scalar_lea.vmem %s8, 7
    %v1975 = vld [vmem:[%s1974] ss:$8 sm:$0xf]
    %v1977 = vlaneseq
    %v1978 = vshrl.u32 %v1977, 7
    %v1979 = vsub.s32 0, %v1978
    %v1980 = vrot.slane %v1975, %v1979
    %v1981 = vlaneseq
    %v1982 = vshrl.u32 %v1981, 7
    %v1983 = vsub.s32 1, %v1982
    %v1984 = vrot.slane %v1975, %v1983
    %v1985 = vlaneseq
    %v1986 = vshrl.u32 %v1985, 7
    %v1987 = vsub.s32 2, %v1986
    %v1988 = vrot.slane %v1975, %v1987
    %v1989 = vlaneseq
    %v1990 = vshrl.u32 %v1989, 7
    %v1991 = vsub.s32 3, %v1990
    %v1992 = vrot.slane %v1975, %v1991
    %v2029 = vunpack.c.l.b16 %v1941
    %v2030 = vunpack.c.h.b16 %v1941
    %v2031 = vunpack.c.l.b16 %v1942
    %v2032 = vunpack.c.h.b16 %v1942
    %v2033 = vunpack.c.l.b16 %v1943
    %v2034 = vunpack.c.h.b16 %v1943
    %v2035 = vunpack.c.l.b16 %v1944
    %v2036 = vunpack.c.h.b16 %v1944
    %v2037 = vunpack.c.l.b16 %v1945
    %v2038 = vunpack.c.h.b16 %v1945
    %v2039 = vunpack.c.l.b16 %v1946
    %v2040 = vunpack.c.h.b16 %v1946
    %v2041 = vunpack.c.l.b16 %v1947
    %v2042 = vunpack.c.h.b16 %v1947
    %v2043 = vunpack.c.l.b16 %v1948
    %v2044 = vunpack.c.h.b16 %v1948
    %v2045 = vunpack.c.l.b16 %v1949
    %v2046 = vunpack.c.h.b16 %v1949
    %v2047 = vunpack.c.l.b16 %v1950
    %v2048 = vunpack.c.h.b16 %v1950
    %v2049 = vunpack.c.l.b16 %v1951
    %v2050 = vunpack.c.h.b16 %v1951
    %v2051 = vunpack.c.l.b16 %v1952
    %v2052 = vunpack.c.h.b16 %v1952
    %v2053 = vunpack.c.l.b16 %v1953
    %v2054 = vunpack.c.h.b16 %v1953
    %v2055 = vunpack.c.l.b16 %v1954
    %v2056 = vunpack.c.h.b16 %v1954
    %v2057 = vunpack.c.l.b16 %v1955
    %v2058 = vunpack.c.h.b16 %v1955
    %v2059 = vunpack.c.l.b16 %v1956
    %v2060 = vunpack.c.h.b16 %v1956
    %v2061 = vunpack.c.l.b16 %v1957
    %v2062 = vunpack.c.h.b16 %v1957
    %v2063 = vunpack.c.l.b16 %v1958
    %v2064 = vunpack.c.h.b16 %v1958
    %v2065 = vunpack.c.l.b16 %v1959
    %v2066 = vunpack.c.h.b16 %v1959
    %v2067 = vunpack.c.l.b16 %v1960
    %v2068 = vunpack.c.h.b16 %v1960
    %v2069 = vunpack.c.l.b16 %v1961
    %v2070 = vunpack.c.h.b16 %v1961
    %v2071 = vunpack.c.l.b16 %v1962
    %v2072 = vunpack.c.h.b16 %v1962
    %v2073 = vunpack.c.l.b16 %v1963
    %v2074 = vunpack.c.h.b16 %v1963
    %v2075 = vunpack.c.l.b16 %v1964
    %v2076 = vunpack.c.h.b16 %v1964
    %v2077 = vunpack.c.l.b16 %v1965
    %v2078 = vunpack.c.h.b16 %v1965
    %v2079 = vunpack.c.l.b16 %v1966
    %v2080 = vunpack.c.h.b16 %v1966
    %v2081 = vunpack.c.l.b16 %v1967
    %v2082 = vunpack.c.h.b16 %v1967
    %v2083 = vunpack.c.l.b16 %v1968
    %v2084 = vunpack.c.h.b16 %v1968
    %v2085 = vunpack.c.l.b16 %v1969
    %v2086 = vunpack.c.h.b16 %v1969
    %v2087 = vunpack.c.l.b16 %v1970
    %v2088 = vunpack.c.h.b16 %v1970
    %v2089 = vunpack.c.l.b16 %v1971
    %v2090 = vunpack.c.h.b16 %v1971
    %v2091 = vunpack.c.l.b16 %v1972
    %v2092 = vunpack.c.h.b16 %v1972
    %v2093 = vpack.c.b16 %v2033, %v2029
    %v2094 = vpack.c.b16 %v2034, %v2030
    %v2095 = vpack.c.b16 %v2035, %v2031
    %v2096 = vpack.c.b16 %v2036, %v2032
    %v2097 = vpack.c.b16 %v2041, %v2037
    %v2098 = vpack.c.b16 %v2042, %v2038
    %v2099 = vpack.c.b16 %v2043, %v2039
    %v2100 = vpack.c.b16 %v2044, %v2040
    %v2101 = vpack.c.b16 %v2049, %v2045
    %v2102 = vpack.c.b16 %v2050, %v2046
    %v2103 = vpack.c.b16 %v2051, %v2047
    %v2104 = vpack.c.b16 %v2052, %v2048
    %v2105 = vpack.c.b16 %v2057, %v2053
    %v2106 = vpack.c.b16 %v2058, %v2054
    %v2107 = vpack.c.b16 %v2059, %v2055
    %v2108 = vpack.c.b16 %v2060, %v2056
    %v2109 = vpack.c.b16 %v2065, %v2061
    %v2110 = vpack.c.b16 %v2066, %v2062
    %v2111 = vpack.c.b16 %v2067, %v2063
    %v2112 = vpack.c.b16 %v2068, %v2064
    %v2113 = vpack.c.b16 %v2073, %v2069
    %v2114 = vpack.c.b16 %v2074, %v2070
    %v2115 = vpack.c.b16 %v2075, %v2071
    %v2116 = vpack.c.b16 %v2076, %v2072
    %v2117 = vpack.c.b16 %v2081, %v2077
    %v2118 = vpack.c.b16 %v2082, %v2078
    %v2119 = vpack.c.b16 %v2083, %v2079
    %v2120 = vpack.c.b16 %v2084, %v2080
    %v2121 = vpack.c.b16 %v2089, %v2085
    %v2122 = vpack.c.b16 %v2090, %v2086
    %v2123 = vpack.c.b16 %v2091, %v2087
    %v2124 = vpack.c.b16 %v2092, %v2088
    %2157 = vmatprep.subr.bf16.mxu0 %v2094
    %2158 = vmatpush1.bf16.msra.mxu0 %v2093
    %2159 = vmatprep.subr.bf16.mxu0 %v2098
    %2160 = vmatpush1.bf16.msra.mxu0 %v2097
    %2161 = vmatprep.subr.bf16.mxu0 %v2102
    %2162 = vmatpush1.bf16.msra.mxu0 %v2101
    %2163 = vmatprep.subr.bf16.mxu0 %v2106
    %2164 = vmatpush1.bf16.msra.mxu0 %v2105
    %2165 = vmatprep.subr.bf16.mxu0 %v2110
    %2166 = vmatpush1.bf16.msra.mxu0 %v2109
    %2167 = vmatprep.subr.bf16.mxu0 %v2114
    %2168 = vmatpush1.bf16.msra.mxu0 %v2113
    %2169 = vmatprep.subr.bf16.mxu0 %v2118
    %2170 = vmatpush1.bf16.msra.mxu0 %v2117
    %2171 = vmatprep.subr.bf16.mxu0 %v2122
    %2172 = vmatpush1.bf16.msra.mxu0 %v2121
    %2173 = vmatprep.subr.bf16.mxu0 0
    %2174 = vmatpush1.bf16.msra.mxu0 0
    %2175 = vmatprep.subr.bf16.mxu0 0
    %2176 = vmatpush1.bf16.msra.mxu0 0
    %2177 = vmatprep.subr.bf16.mxu0 0
    %2178 = vmatpush1.bf16.msra.mxu0 0
    %2179 = vmatprep.subr.bf16.mxu0 0
    %2180 = vmatpush1.bf16.msra.mxu0 0
    %2181 = vmatprep.subr.bf16.mxu0 0
    %2182 = vmatpush1.bf16.msra.mxu0 0
    %2183 = vmatprep.subr.bf16.mxu0 0
    %2184 = vmatpush1.bf16.msra.mxu0 0
    %2185 = vmatprep.subr.bf16.mxu0 0
    %2186 = vmatpush1.bf16.msra.mxu0 0
    %2187 = vmatprep.subr.bf16.mxu0 0
    %2188 = vmatpush1.bf16.msra.mxu0 0
    %2189 = vmatprep.mubr.bf16.mxu0 0
    %2190 = vmatmul.mubr.bf16.gmra.mrb[0].mxu0 %v1973
    %v2191 = vpop.f32.mrb[0].mxu0
    %v2192 = vadd.f32 %v1980, %v2191
    %v2193 = vpop.f32.mrb[0].mxu0
    %v2194 = vadd.f32 %v1984, %v2193
    %v2195 = vpop.f32.mrb[0].mxu0
    %v2196 = vpop.f32.mrb[0].mxu0
    %2197 = vdwg.mxu0
    %2198 = vmatprep.subr.bf16.mxu0 %v2096
    %2199 = vmatpush1.bf16.msra.mxu0 %v2095
    %2200 = vmatprep.subr.bf16.mxu0 %v2100
    %2201 = vmatpush1.bf16.msra.mxu0 %v2099
    %2202 = vmatprep.subr.bf16.mxu0 %v2104
    %2203 = vmatpush1.bf16.msra.mxu0 %v2103
    %2204 = vmatprep.subr.bf16.mxu0 %v2108
    %2205 = vmatpush1.bf16.msra.mxu0 %v2107
    %2206 = vmatprep.subr.bf16.mxu0 %v2112
    %2207 = vmatpush1.bf16.msra.mxu0 %v2111
    %2208 = vmatprep.subr.bf16.mxu0 %v2116
    %2209 = vmatpush1.bf16.msra.mxu0 %v2115
    %2210 = vmatprep.subr.bf16.mxu0 %v2120
    %2211 = vmatpush1.bf16.msra.mxu0 %v2119
    %2212 = vmatprep.subr.bf16.mxu0 %v2124
    %2213 = vmatpush1.bf16.msra.mxu0 %v2123
    %2214 = vmatprep.subr.bf16.mxu0 0
    %2215 = vmatpush1.bf16.msra.mxu0 0
    %2216 = vmatprep.subr.bf16.mxu0 0
    %2217 = vmatpush1.bf16.msra.mxu0 0
    %2218 = vmatprep.subr.bf16.mxu0 0
    %2219 = vmatpush1.bf16.msra.mxu0 0
    %2220 = vmatprep.subr.bf16.mxu0 0
    %2221 = vmatpush1.bf16.msra.mxu0 0
    %2222 = vmatprep.subr.bf16.mxu0 0
    %2223 = vmatpush1.bf16.msra.mxu0 0
    %2224 = vmatprep.subr.bf16.mxu0 0
    %2225 = vmatpush1.bf16.msra.mxu0 0
    %2226 = vmatprep.subr.bf16.mxu0 0
    %2227 = vmatpush1.bf16.msra.mxu0 0
    %2228 = vmatprep.subr.bf16.mxu0 0
    %2229 = vmatpush1.bf16.msra.mxu0 0
    %2230 = vmatprep.mubr.bf16.mxu0 0
    %2231 = vmatmul.mubr.bf16.gmra.mrb[0].mxu0 %v1973
    %v2232 = vpop.f32.mrb[0].mxu0
    %v2233 = vpop.f32.mrb[0].mxu0
    %v2234 = vpop.f32.mrb[0].mxu0
    %v2235 = vadd.f32 %v1988, %v2234
    %v2236 = vpop.f32.mrb[0].mxu0
    %v2237 = vadd.f32 %v1992, %v2236
    %2238 = vdwg.mxu0
    %v2239 = vmax.f32 %v2192, 0.0
    %v2240 = vmax.f32 %v2194, 0.0
    %v2241 = vmax.f32 %v2235, 0.0
    %v2242 = vmax.f32 %v2237, 0.0
    %v2243 = vld [vmem:[%s6] sm:$0xff]
    %v2244 = vld [vmem:[%s6 + $0x8] sm:$0xff]
    %v2245 = vld [vmem:[%s6 + $0x10] sm:$0xf]
    %v2246 = vld [vmem:[%s6 + $0x18] sm:$0xff]
    %v2247 = vld [vmem:[%s6 + $0x20] sm:$0xff]
    %v2248 = vld [vmem:[%s6 + $0x28] sm:$0xf]
    %v2249 = vld [vmem:[%s6 + $0x30] sm:$0xff]
    %v2250 = vld [vmem:[%s6 + $0x38] sm:$0xff]
    %v2251 = vld [vmem:[%s6 + $0x40] sm:$0xf]
    %v2252 = vld [vmem:[%s6 + $0x48] sm:$0xff]
    %v2253 = vld [vmem:[%s6 + $0x50] sm:$0xff]
    %v2254 = vld [vmem:[%s6 + $0x58] sm:$0xf]
    %v2255 = vld [vmem:[%s6 + $0x60] sm:$0xff]
    %v2256 = vld [vmem:[%s6 + $0x68] sm:$0xff]
    %v2257 = vld [vmem:[%s6 + $0x70] sm:$0xf]
    %v2258 = vld [vmem:[%s6 + $0x78] sm:$0xff]
    %v2259 = vld [vmem:[%s6 + $0x80] sm:$0xff]
    %v2260 = vld [vmem:[%s6 + $0x88] sm:$0xf]
    %v2261 = vld [vmem:[%s6 + $0x90] sm:$0xff]
    %v2262 = vld [vmem:[%s6 + $0x98] sm:$0xff]
    %v2263 = vld [vmem:[%s6 + $0xa0] sm:$0xf]
    %v2264 = vld [vmem:[%s6 + $0xa8] sm:$0xff]
    %v2265 = vld [vmem:[%s6 + $0xb0] sm:$0xff]
    %v2266 = vld [vmem:[%s6 + $0xb8] sm:$0xf]
    %v2267 = vld [vmem:[%s6 + $0xc0] sm:$0xff]
    %v2268 = vld [vmem:[%s6 + $0xc8] sm:$0xff]
    %v2269 = vld [vmem:[%s6 + $0xd0] sm:$0xf]
    %v2270 = vld [vmem:[%s6 + $0xd8] sm:$0xff]
    %v2271 = vld [vmem:[%s6 + $0xe0] sm:$0xff]
    %v2272 = vld [vmem:[%s6 + $0xe8] sm:$0xf]
    %v2273 = vld [vmem:[%s6 + $0xf0] sm:$0xff]
    %v2274 = vld [vmem:[%s6 + $0xf8] sm:$0xff]
    %v2275 = vld [vmem:[%s6 + $0x100] sm:$0xf]
    %v2276 = vld [vmem:[%s6 + $0x108] sm:$0xff]
    %v2277 = vld [vmem:[%s6 + $0x110] sm:$0xff]
    %v2278 = vld [vmem:[%s6 + $0x118] sm:$0xf]
    %v2279 = vld [vmem:[%s6 + $0x120] sm:$0xff]
    %v2280 = vld [vmem:[%s6 + $0x128] sm:$0xff]
    %v2281 = vld [vmem:[%s6 + $0x130] sm:$0xf]
    %v2282 = vld [vmem:[%s6 + $0x138] sm:$0xff]
    %v2283 = vld [vmem:[%s6 + $0x140] sm:$0xff]
    %v2284 = vld [vmem:[%s6 + $0x148] sm:$0xf]
    %v2285 = vld [vmem:[%s6 + $0x150] sm:$0xff]
    %v2286 = vld [vmem:[%s6 + $0x158] sm:$0xff]
    %v2287 = vld [vmem:[%s6 + $0x160] sm:$0xf]
    %v2288 = vld [vmem:[%s6 + $0x168] sm:$0xff]
    %v2289 = vld [vmem:[%s6 + $0x170] sm:$0xff]
    %v2290 = vld [vmem:[%s6 + $0x178] sm:$0xf]
    %v2291 = vld [vmem:[%s6 + $0x180] sm:$0xff]
    %v2292 = vld [vmem:[%s6 + $0x188] sm:$0xff]
    %v2293 = vld [vmem:[%s6 + $0x190] sm:$0xf]
    %v2294 = vld [vmem:[%s6 + $0x198] sm:$0xff]
    %v2295 = vld [vmem:[%s6 + $0x1a0] sm:$0xff]
    %v2296 = vld [vmem:[%s6 + $0x1a8] sm:$0xf]
    %v2297 = vld [vmem:[%s6 + $0x1b0] sm:$0xff]
    %v2298 = vld [vmem:[%s6 + $0x1b8] sm:$0xff]
    %v2299 = vld [vmem:[%s6 + $0x1c0] sm:$0xf]
    %v2300 = vld [vmem:[%s6 + $0x1c8] sm:$0xff]
    %v2301 = vld [vmem:[%s6 + $0x1d0] sm:$0xff]
    %v2302 = vld [vmem:[%s6 + $0x1d8] sm:$0xf]
    %v2303 = vld [vmem:[%s6 + $0x1e0] sm:$0xff]
    %v2304 = vld [vmem:[%s6 + $0x1e8] sm:$0xff]
    %v2305 = vld [vmem:[%s6 + $0x1f0] sm:$0xf]
    %v2306 = vld [vmem:[%s6 + $0x1f8] sm:$0xff]
    %v2307 = vld [vmem:[%s6 + $0x200] sm:$0xff]
    %v2308 = vld [vmem:[%s6 + $0x208] sm:$0xf]
    %v2309 = vld [vmem:[%s6 + $0x210] sm:$0xff]
    %v2310 = vld [vmem:[%s6 + $0x218] sm:$0xff]
    %v2311 = vld [vmem:[%s6 + $0x220] sm:$0xf]
    %v2312 = vld [vmem:[%s6 + $0x228] sm:$0xff]
    %v2313 = vld [vmem:[%s6 + $0x230] sm:$0xff]
    %v2314 = vld [vmem:[%s6 + $0x238] sm:$0xf]
    %v2315 = vld [vmem:[%s6 + $0x240] sm:$0xff]
    %v2316 = vld [vmem:[%s6 + $0x248] sm:$0xff]
    %v2317 = vld [vmem:[%s6 + $0x250] sm:$0xf]
    %v2318 = vld [vmem:[%s6 + $0x258] sm:$0xff]
    %v2319 = vld [vmem:[%s6 + $0x260] sm:$0xff]
    %v2320 = vld [vmem:[%s6 + $0x268] sm:$0xf]
    %v2321 = vld [vmem:[%s6 + $0x270] sm:$0xff]
    %v2322 = vld [vmem:[%s6 + $0x278] sm:$0xff]
    %v2323 = vld [vmem:[%s6 + $0x280] sm:$0xf]
    %v2324 = vld [vmem:[%s6 + $0x288] sm:$0xff]
    %v2325 = vld [vmem:[%s6 + $0x290] sm:$0xff]
    %v2326 = vld [vmem:[%s6 + $0x298] sm:$0xf]
    %v2327 = vld [vmem:[%s6 + $0x2a0] sm:$0xff]
    %v2328 = vld [vmem:[%s6 + $0x2a8] sm:$0xff]
    %v2329 = vld [vmem:[%s6 + $0x2b0] sm:$0xf]
    %v2330 = vld [vmem:[%s6 + $0x2b8] sm:$0xff]
    %v2331 = vld [vmem:[%s6 + $0x2c0] sm:$0xff]
    %v2332 = vld [vmem:[%s6 + $0x2c8] sm:$0xf]
    %v2333 = vld [vmem:[%s6 + $0x2d0] sm:$0xff]
    %v2334 = vld [vmem:[%s6 + $0x2d8] sm:$0xff]
    %v2335 = vld [vmem:[%s6 + $0x2e0] sm:$0xf]
    %v2336 = vld [vmem:[%s6 + $0x2e8] sm:$0xff]
    %v2337 = vld [vmem:[%s6 + $0x2f0] sm:$0xff]
    %v2338 = vld [vmem:[%s6 + $0x2f8] sm:$0xf]
    %v2339 = vpack.c.bf16 %v2241, %v2239
    %v2340 = vpack.c.bf16 %v2242, %v2240
    %s2341 = scalar_lea.vmem %s8, 40
    %v2342 = vld [vmem:[%s2341] ss:$8 sm:$0xf]
    %v2343 = vld [vmem:[%s2341] ss:$8 sm:$0x10]
    %v2344 = vor.u32 %v2342, %v2343
    %v2346 = vlaneseq
    %v2347 = vshrl.u32 %v2346, 7
    %v2348 = vsub.s32 0, %v2347
    %v2349 = vrot.slane %v2344, %v2348
    %v2350 = vlaneseq
    %v2351 = vshrl.u32 %v2350, 7
    %v2352 = vsub.s32 1, %v2351
    %v2353 = vrot.slane %v2344, %v2352
    %v2354 = vlaneseq
    %v2355 = vshrl.u32 %v2354, 7
    %v2356 = vsub.s32 2, %v2355
    %v2357 = vrot.slane %v2344, %v2356
    %v2358 = vlaneseq
    %v2359 = vshrl.u32 %v2358, 7
    %v2360 = vsub.s32 3, %v2359
    %v2361 = vrot.slane %v2344, %v2360
    %v2362 = vlaneseq
    %v2363 = vshrl.u32 %v2362, 7
    %v2364 = vsub.s32 4, %v2363
    %v2365 = vrot.slane %v2344, %v2364
    %v2467 = vunpack.c.l.b16 %v2243
    %v2468 = vunpack.c.h.b16 %v2243
    %v2469 = vunpack.c.l.b16 %v2244
    %v2470 = vunpack.c.h.b16 %v2244
    %v2471 = vunpack.c.l.b16 %v2245
    %v2472 = vunpack.c.l.b16 %v2246
    %v2473 = vunpack.c.h.b16 %v2246
    %v2474 = vunpack.c.l.b16 %v2247
    %v2475 = vunpack.c.h.b16 %v2247
    %v2476 = vunpack.c.l.b16 %v2248
    %v2477 = vunpack.c.l.b16 %v2249
    %v2478 = vunpack.c.h.b16 %v2249
    %v2479 = vunpack.c.l.b16 %v2250
    %v2480 = vunpack.c.h.b16 %v2250
    %v2481 = vunpack.c.l.b16 %v2251
    %v2482 = vunpack.c.l.b16 %v2252
    %v2483 = vunpack.c.h.b16 %v2252
    %v2484 = vunpack.c.l.b16 %v2253
    %v2485 = vunpack.c.h.b16 %v2253
    %v2486 = vunpack.c.l.b16 %v2254
    %v2487 = vunpack.c.l.b16 %v2255
    %v2488 = vunpack.c.h.b16 %v2255
    %v2489 = vunpack.c.l.b16 %v2256
    %v2490 = vunpack.c.h.b16 %v2256
    %v2491 = vunpack.c.l.b16 %v2257
    %v2492 = vunpack.c.l.b16 %v2258
    %v2493 = vunpack.c.h.b16 %v2258
    %v2494 = vunpack.c.l.b16 %v2259
    %v2495 = vunpack.c.h.b16 %v2259
    %v2496 = vunpack.c.l.b16 %v2260
    %v2497 = vunpack.c.l.b16 %v2261
    %v2498 = vunpack.c.h.b16 %v2261
    %v2499 = vunpack.c.l.b16 %v2262
    %v2500 = vunpack.c.h.b16 %v2262
    %v2501 = vunpack.c.l.b16 %v2263
    %v2502 = vunpack.c.l.b16 %v2264
    %v2503 = vunpack.c.h.b16 %v2264
    %v2504 = vunpack.c.l.b16 %v2265
    %v2505 = vunpack.c.h.b16 %v2265
    %v2506 = vunpack.c.l.b16 %v2266
    %v2507 = vunpack.c.l.b16 %v2267
    %v2508 = vunpack.c.h.b16 %v2267
    %v2509 = vunpack.c.l.b16 %v2268
    %v2510 = vunpack.c.h.b16 %v2268
    %v2511 = vunpack.c.l.b16 %v2269
    %v2512 = vunpack.c.l.b16 %v2270
    %v2513 = vunpack.c.h.b16 %v2270
    %v2514 = vunpack.c.l.b16 %v2271
    %v2515 = vunpack.c.h.b16 %v2271
    %v2516 = vunpack.c.l.b16 %v2272
    %v2517 = vunpack.c.l.b16 %v2273
    %v2518 = vunpack.c.h.b16 %v2273
    %v2519 = vunpack.c.l.b16 %v2274
    %v2520 = vunpack.c.h.b16 %v2274
    %v2521 = vunpack.c.l.b16 %v2275
    %v2522 = vunpack.c.l.b16 %v2276
    %v2523 = vunpack.c.h.b16 %v2276
    %v2524 = vunpack.c.l.b16 %v2277
    %v2525 = vunpack.c.h.b16 %v2277
    %v2526 = vunpack.c.l.b16 %v2278
    %v2527 = vunpack.c.l.b16 %v2279
    %v2528 = vunpack.c.h.b16 %v2279
    %v2529 = vunpack.c.l.b16 %v2280
    %v2530 = vunpack.c.h.b16 %v2280
    %v2531 = vunpack.c.l.b16 %v2281
    %v2532 = vunpack.c.l.b16 %v2282
    %v2533 = vunpack.c.h.b16 %v2282
    %v2534 = vunpack.c.l.b16 %v2283
    %v2535 = vunpack.c.h.b16 %v2283
    %v2536 = vunpack.c.l.b16 %v2284
    %v2537 = vunpack.c.l.b16 %v2285
    %v2538 = vunpack.c.h.b16 %v2285
    %v2539 = vunpack.c.l.b16 %v2286
    %v2540 = vunpack.c.h.b16 %v2286
    %v2541 = vunpack.c.l.b16 %v2287
    %v2542 = vunpack.c.l.b16 %v2288
    %v2543 = vunpack.c.h.b16 %v2288
    %v2544 = vunpack.c.l.b16 %v2289
    %v2545 = vunpack.c.h.b16 %v2289
    %v2546 = vunpack.c.l.b16 %v2290
    %v2547 = vunpack.c.l.b16 %v2291
    %v2548 = vunpack.c.h.b16 %v2291
    %v2549 = vunpack.c.l.b16 %v2292
    %v2550 = vunpack.c.h.b16 %v2292
    %v2551 = vunpack.c.l.b16 %v2293
    %v2552 = vunpack.c.l.b16 %v2294
    %v2553 = vunpack.c.h.b16 %v2294
    %v2554 = vunpack.c.l.b16 %v2295
    %v2555 = vunpack.c.h.b16 %v2295
    %v2556 = vunpack.c.l.b16 %v2296
    %v2557 = vunpack.c.l.b16 %v2297
    %v2558 = vunpack.c.h.b16 %v2297
    %v2559 = vunpack.c.l.b16 %v2298
    %v2560 = vunpack.c.h.b16 %v2298
    %v2561 = vunpack.c.l.b16 %v2299
    %v2562 = vunpack.c.l.b16 %v2300
    %v2563 = vunpack.c.h.b16 %v2300
    %v2564 = vunpack.c.l.b16 %v2301
    %v2565 = vunpack.c.h.b16 %v2301
    %v2566 = vunpack.c.l.b16 %v2302
    %v2567 = vunpack.c.l.b16 %v2303
    %v2568 = vunpack.c.h.b16 %v2303
    %v2569 = vunpack.c.l.b16 %v2304
    %v2570 = vunpack.c.h.b16 %v2304
    %v2571 = vunpack.c.l.b16 %v2305
    %v2572 = vunpack.c.l.b16 %v2306
    %v2573 = vunpack.c.h.b16 %v2306
    %v2574 = vunpack.c.l.b16 %v2307
    %v2575 = vunpack.c.h.b16 %v2307
    %v2576 = vunpack.c.l.b16 %v2308
    %v2577 = vunpack.c.l.b16 %v2309
    %v2578 = vunpack.c.h.b16 %v2309
    %v2579 = vunpack.c.l.b16 %v2310
    %v2580 = vunpack.c.h.b16 %v2310
    %v2581 = vunpack.c.l.b16 %v2311
    %v2582 = vunpack.c.l.b16 %v2312
    %v2583 = vunpack.c.h.b16 %v2312
    %v2584 = vunpack.c.l.b16 %v2313
    %v2585 = vunpack.c.h.b16 %v2313
    %v2586 = vunpack.c.l.b16 %v2314
    %v2587 = vunpack.c.l.b16 %v2315
    %v2588 = vunpack.c.h.b16 %v2315
    %v2589 = vunpack.c.l.b16 %v2316
    %v2590 = vunpack.c.h.b16 %v2316
    %v2591 = vunpack.c.l.b16 %v2317
    %v2592 = vunpack.c.l.b16 %v2318
    %v2593 = vunpack.c.h.b16 %v2318
    %v2594 = vunpack.c.l.b16 %v2319
    %v2595 = vunpack.c.h.b16 %v2319
    %v2596 = vunpack.c.l.b16 %v2320
    %v2597 = vunpack.c.l.b16 %v2321
    %v2598 = vunpack.c.h.b16 %v2321
    %v2599 = vunpack.c.l.b16 %v2322
    %v2600 = vunpack.c.h.b16 %v2322
    %v2601 = vunpack.c.l.b16 %v2323
    %v2602 = vunpack.c.l.b16 %v2324
    %v2603 = vunpack.c.h.b16 %v2324
    %v2604 = vunpack.c.l.b16 %v2325
    %v2605 = vunpack.c.h.b16 %v2325
    %v2606 = vunpack.c.l.b16 %v2326
    %v2607 = vunpack.c.l.b16 %v2327
    %v2608 = vunpack.c.h.b16 %v2327
    %v2609 = vunpack.c.l.b16 %v2328
    %v2610 = vunpack.c.h.b16 %v2328
    %v2611 = vunpack.c.l.b16 %v2329
    %v2612 = vunpack.c.l.b16 %v2330
    %v2613 = vunpack.c.h.b16 %v2330
    %v2614 = vunpack.c.l.b16 %v2331
    %v2615 = vunpack.c.h.b16 %v2331
    %v2616 = vunpack.c.l.b16 %v2332
    %v2617 = vunpack.c.l.b16 %v2333
    %v2618 = vunpack.c.h.b16 %v2333
    %v2619 = vunpack.c.l.b16 %v2334
    %v2620 = vunpack.c.h.b16 %v2334
    %v2621 = vunpack.c.l.b16 %v2335
    %v2622 = vunpack.c.l.b16 %v2336
    %v2623 = vunpack.c.h.b16 %v2336
    %v2624 = vunpack.c.l.b16 %v2337
    %v2625 = vunpack.c.h.b16 %v2337
    %v2626 = vunpack.c.l.b16 %v2338
    %v2627 = vpack.c.b16 %v2472, %v2467
    %v2628 = vpack.c.b16 %v2473, %v2468
    %v2629 = vpack.c.b16 %v2474, %v2469
    %v2630 = vpack.c.b16 %v2475, %v2470
    %v2631 = vpack.c.b16 %v2476, %v2471
    %v2632 = vpack.c.b16 %v2482, %v2477
    %v2633 = vpack.c.b16 %v2483, %v2478
    %v2634 = vpack.c.b16 %v2484, %v2479
    %v2635 = vpack.c.b16 %v2485, %v2480
    %v2636 = vpack.c.b16 %v2486, %v2481
    %v2637 = vpack.c.b16 %v2492, %v2487
    %v2638 = vpack.c.b16 %v2493, %v2488
    %v2639 = vpack.c.b16 %v2494, %v2489
    %v2640 = vpack.c.b16 %v2495, %v2490
    %v2641 = vpack.c.b16 %v2496, %v2491
    %v2642 = vpack.c.b16 %v2502, %v2497
    %v2643 = vpack.c.b16 %v2503, %v2498
    %v2644 = vpack.c.b16 %v2504, %v2499
    %v2645 = vpack.c.b16 %v2505, %v2500
    %v2646 = vpack.c.b16 %v2506, %v2501
    %v2647 = vpack.c.b16 %v2512, %v2507
    %v2648 = vpack.c.b16 %v2513, %v2508
    %v2649 = vpack.c.b16 %v2514, %v2509
    %v2650 = vpack.c.b16 %v2515, %v2510
    %v2651 = vpack.c.b16 %v2516, %v2511
    %v2652 = vpack.c.b16 %v2522, %v2517
    %v2653 = vpack.c.b16 %v2523, %v2518
    %v2654 = vpack.c.b16 %v2524, %v2519
    %v2655 = vpack.c.b16 %v2525, %v2520
    %v2656 = vpack.c.b16 %v2526, %v2521
    %v2657 = vpack.c.b16 %v2532, %v2527
    %v2658 = vpack.c.b16 %v2533, %v2528
    %v2659 = vpack.c.b16 %v2534, %v2529
    %v2660 = vpack.c.b16 %v2535, %v2530
    %v2661 = vpack.c.b16 %v2536, %v2531
    %v2662 = vpack.c.b16 %v2542, %v2537
    %v2663 = vpack.c.b16 %v2543, %v2538
    %v2664 = vpack.c.b16 %v2544, %v2539
    %v2665 = vpack.c.b16 %v2545, %v2540
    %v2666 = vpack.c.b16 %v2546, %v2541
    %v2667 = vpack.c.b16 %v2552, %v2547
    %v2668 = vpack.c.b16 %v2553, %v2548
    %v2669 = vpack.c.b16 %v2554, %v2549
    %v2670 = vpack.c.b16 %v2555, %v2550
    %v2671 = vpack.c.b16 %v2556, %v2551
    %v2672 = vpack.c.b16 %v2562, %v2557
    %v2673 = vpack.c.b16 %v2563, %v2558
    %v2674 = vpack.c.b16 %v2564, %v2559
    %v2675 = vpack.c.b16 %v2565, %v2560
    %v2676 = vpack.c.b16 %v2566, %v2561
    %v2677 = vpack.c.b16 %v2572, %v2567
    %v2678 = vpack.c.b16 %v2573, %v2568
    %v2679 = vpack.c.b16 %v2574, %v2569
    %v2680 = vpack.c.b16 %v2575, %v2570
    %v2681 = vpack.c.b16 %v2576, %v2571
    %v2682 = vpack.c.b16 %v2582, %v2577
    %v2683 = vpack.c.b16 %v2583, %v2578
    %v2684 = vpack.c.b16 %v2584, %v2579
    %v2685 = vpack.c.b16 %v2585, %v2580
    %v2686 = vpack.c.b16 %v2586, %v2581
    %v2687 = vpack.c.b16 %v2592, %v2587
    %v2688 = vpack.c.b16 %v2593, %v2588
    %v2689 = vpack.c.b16 %v2594, %v2589
    %v2690 = vpack.c.b16 %v2595, %v2590
    %v2691 = vpack.c.b16 %v2596, %v2591
    %v2692 = vpack.c.b16 %v2602, %v2597
    %v2693 = vpack.c.b16 %v2603, %v2598
    %v2694 = vpack.c.b16 %v2604, %v2599
    %v2695 = vpack.c.b16 %v2605, %v2600
    %v2696 = vpack.c.b16 %v2606, %v2601
    %v2697 = vpack.c.b16 %v2612, %v2607
    %v2698 = vpack.c.b16 %v2613, %v2608
    %v2699 = vpack.c.b16 %v2614, %v2609
    %v2700 = vpack.c.b16 %v2615, %v2610
    %v2701 = vpack.c.b16 %v2616, %v2611
    %v2702 = vpack.c.b16 %v2622, %v2617
    %v2703 = vpack.c.b16 %v2623, %v2618
    %v2704 = vpack.c.b16 %v2624, %v2619
    %v2705 = vpack.c.b16 %v2625, %v2620
    %v2706 = vpack.c.b16 %v2626, %v2621
    %2787 = vmatprep.subr.bf16.mxu0 %v2628
    %2788 = vmatpush1.bf16.msra.mxu0 %v2627
    %2789 = vmatprep.subr.bf16.mxu0 %v2633
    %2790 = vmatpush1.bf16.msra.mxu0 %v2632
    %2791 = vmatprep.subr.bf16.mxu0 %v2638
    %2792 = vmatpush1.bf16.msra.mxu0 %v2637
    %2793 = vmatprep.subr.bf16.mxu0 %v2643
    %2794 = vmatpush1.bf16.msra.mxu0 %v2642
    %2795 = vmatprep.subr.bf16.mxu0 %v2648
    %2796 = vmatpush1.bf16.msra.mxu0 %v2647
    %2797 = vmatprep.subr.bf16.mxu0 %v2653
    %2798 = vmatpush1.bf16.msra.mxu0 %v2652
    %2799 = vmatprep.subr.bf16.mxu0 %v2658
    %2800 = vmatpush1.bf16.msra.mxu0 %v2657
    %2801 = vmatprep.subr.bf16.mxu0 %v2663
    %2802 = vmatpush1.bf16.msra.mxu0 %v2662
    %2803 = vmatprep.subr.bf16.mxu0 %v2668
    %2804 = vmatpush1.bf16.msra.mxu0 %v2667
    %2805 = vmatprep.subr.bf16.mxu0 %v2673
    %2806 = vmatpush1.bf16.msra.mxu0 %v2672
    %2807 = vmatprep.subr.bf16.mxu0 %v2678
    %2808 = vmatpush1.bf16.msra.mxu0 %v2677
    %2809 = vmatprep.subr.bf16.mxu0 %v2683
    %2810 = vmatpush1.bf16.msra.mxu0 %v2682
    %2811 = vmatprep.subr.bf16.mxu0 %v2688
    %2812 = vmatpush1.bf16.msra.mxu0 %v2687
    %2813 = vmatprep.subr.bf16.mxu0 %v2693
    %2814 = vmatpush1.bf16.msra.mxu0 %v2692
    %2815 = vmatprep.subr.bf16.mxu0 %v2698
    %2816 = vmatpush1.bf16.msra.mxu0 %v2697
    %2817 = vmatprep.subr.bf16.mxu0 %v2703
    %2818 = vmatpush1.bf16.msra.mxu0 %v2702
    %2819 = vmatprep.mubr.bf16.mxu0 %v2340
    %2820 = vmatmul.mubr.bf16.gmra.mrb[0].mxu0 %v2339
    %v2821 = vpop.f32.mrb[0].mxu0
    %v2822 = vadd.f32 %v2349, %v2821
    %v2823 = vpop.f32.mrb[0].mxu0
    %v2824 = vadd.f32 %v2353, %v2823
    %v2825 = vpop.f32.mrb[0].mxu0
    %v2826 = vpop.f32.mrb[0].mxu0
    %2827 = vdwg.mxu0
    %2828 = vmatprep.subr.bf16.mxu0 %v2630
    %2829 = vmatpush1.bf16.msra.mxu0 %v2629
    %2830 = vmatprep.subr.bf16.mxu0 %v2635
    %2831 = vmatpush1.bf16.msra.mxu0 %v2634
    %2832 = vmatprep.subr.bf16.mxu0 %v2640
    %2833 = vmatpush1.bf16.msra.mxu0 %v2639
    %2834 = vmatprep.subr.bf16.mxu0 %v2645
    %2835 = vmatpush1.bf16.msra.mxu0 %v2644
    %2836 = vmatprep.subr.bf16.mxu0 %v2650
    %2837 = vmatpush1.bf16.msra.mxu0 %v2649
    %2838 = vmatprep.subr.bf16.mxu0 %v2655
    %2839 = vmatpush1.bf16.msra.mxu0 %v2654
    %2840 = vmatprep.subr.bf16.mxu0 %v2660
    %2841 = vmatpush1.bf16.msra.mxu0 %v2659
    %2842 = vmatprep.subr.bf16.mxu0 %v2665
    %2843 = vmatpush1.bf16.msra.mxu0 %v2664
    %2844 = vmatprep.subr.bf16.mxu0 %v2670
    %2845 = vmatpush1.bf16.msra.mxu0 %v2669
    %2846 = vmatprep.subr.bf16.mxu0 %v2675
    %2847 = vmatpush1.bf16.msra.mxu0 %v2674
    %2848 = vmatprep.subr.bf16.mxu0 %v2680
    %2849 = vmatpush1.bf16.msra.mxu0 %v2679
    %2850 = vmatprep.subr.bf16.mxu0 %v2685
    %2851 = vmatpush1.bf16.msra.mxu0 %v2684
    %2852 = vmatprep.subr.bf16.mxu0 %v2690
    %2853 = vmatpush1.bf16.msra.mxu0 %v2689
    %2854 = vmatprep.subr.bf16.mxu0 %v2695
    %2855 = vmatpush1.bf16.msra.mxu0 %v2694
    %2856 = vmatprep.subr.bf16.mxu0 %v2700
    %2857 = vmatpush1.bf16.msra.mxu0 %v2699
    %2858 = vmatprep.subr.bf16.mxu0 %v2705
    %2859 = vmatpush1.bf16.msra.mxu0 %v2704
    %2860 = vmatprep.mubr.bf16.mxu0 %v2340
    %2861 = vmatmul.mubr.bf16.gmra.mrb[0].mxu0 %v2339
    %v2862 = vpop.f32.mrb[0].mxu0
    %v2863 = vadd.f32 %v2357, %v2862
    %v2864 = vpop.f32.mrb[0].mxu0
    %v2865 = vadd.f32 %v2361, %v2864
    %v2866 = vpop.f32.mrb[0].mxu0
    %v2867 = vpop.f32.mrb[0].mxu0
    %2868 = vdwg.mxu0
    %2869 = vmatprep.subr.bf16.mxu0 0
    %2870 = vmatpush1.bf16.msra.mxu0 %v2631
    %2871 = vmatprep.subr.bf16.mxu0 0
    %2872 = vmatpush1.bf16.msra.mxu0 %v2636
    %2873 = vmatprep.subr.bf16.mxu0 0
    %2874 = vmatpush1.bf16.msra.mxu0 %v2641
    %2875 = vmatprep.subr.bf16.mxu0 0
    %2876 = vmatpush1.bf16.msra.mxu0 %v2646
    %2877 = vmatprep.subr.bf16.mxu0 0
    %2878 = vmatpush1.bf16.msra.mxu0 %v2651
    %2879 = vmatprep.subr.bf16.mxu0 0
    %2880 = vmatpush1.bf16.msra.mxu0 %v2656
    %2881 = vmatprep.subr.bf16.mxu0 0
    %2882 = vmatpush1.bf16.msra.mxu0 %v2661
    %2883 = vmatprep.subr.bf16.mxu0 0
    %2884 = vmatpush1.bf16.msra.mxu0 %v2666
    %2885 = vmatprep.subr.bf16.mxu0 0
    %2886 = vmatpush1.bf16.msra.mxu0 %v2671
    %2887 = vmatprep.subr.bf16.mxu0 0
    %2888 = vmatpush1.bf16.msra.mxu0 %v2676
    %2889 = vmatprep.subr.bf16.mxu0 0
    %2890 = vmatpush1.bf16.msra.mxu0 %v2681
    %2891 = vmatprep.subr.bf16.mxu0 0
    %2892 = vmatpush1.bf16.msra.mxu0 %v2686
    %2893 = vmatprep.subr.bf16.mxu0 0
    %2894 = vmatpush1.bf16.msra.mxu0 %v2691
    %2895 = vmatprep.subr.bf16.mxu0 0
    %2896 = vmatpush1.bf16.msra.mxu0 %v2696
    %2897 = vmatprep.subr.bf16.mxu0 0
    %2898 = vmatpush1.bf16.msra.mxu0 %v2701
    %2899 = vmatprep.subr.bf16.mxu0 0
    %2900 = vmatpush1.bf16.msra.mxu0 %v2706
    %2901 = vmatprep.mubr.bf16.mxu0 %v2340
    %2902 = vmatmul.mubr.bf16.gmra.mrb[0].mxu0 %v2339
    %v2903 = vpop.f32.mrb[0].mxu0
    %v2904 = vpop.f32.mrb[0].mxu0
    %v2905 = vpop.f32.mrb[0].mxu0
    %v2906 = vadd.f32 %v2365, %v2905
    %v2907 = vpop.f32.mrb[0].mxu0
    %2908 = vdwg.mxu0
    %2909 = vst [vmem:[#allocation10] sm:$0xff] %v2822
    %2910 = vst [vmem:[#allocation10 + $0x8] sm:$0xff] %v2824
    %2911 = vst [vmem:[#allocation10 + $0x10] sm:$0xff] %v2863
    %2912 = vst [vmem:[#allocation10 + $0x18] sm:$0xff] %v2865
    %2913 = vst [vmem:[#allocation10 + $0x20] sm:$0xff] %v2906
    %2914 = vst [vmem:[#allocation10 + $0x28] sm:$0xff] %v1822
    // Predicated region
    $region54: #{tpu_custom_call.1} parent=1 // pred_check
      _
    $region55: #{tpu_custom_call.1} parent=1 // pred_check_branch
      %2916 = sbr.rel (0) target = $region57
    $region56: #{tpu_custom_call.1} parent=1 // pred_region
      %s2918 = ssub.s32 768, 768
      %2919 = vsyncadd [#allocation4], %s2918
      %s2921 = sshll.u32 [#allocation10], 4
      %s2922 = int_to_ptr.vmem [resolvable:$true] %s2921
      %2924 = dma.vmem_to_hbm [thread:$0]  %s2922, 768, %s9, [#allocation4]
    $region57: #{tpu_custom_call.1} parent=1 // pred_fallthru
      _
    // Predicated region
    $region58: #{tpu_custom_call.1} parent=1 // pred_check
      _
    $region59: #{tpu_custom_call.1} parent=1 // pred_check_branch
      %2926 = sbr.rel (0) target = $region61
    $region60: #{tpu_custom_call.1} parent=1 // pred_region
      %2927 = dma.done [#allocation4], 768
    $region61: #{tpu_custom_call.1} parent=1 // pred_fallthru
      _
    %2928 = vsyncpa [#allocation3], 1
    %2929 = vsyncpa [#allocation6], 1
    %2930 = vsyncpa [#allocation9], 1
    %2931 = vsyncpa [#allocation4], 1

</llo_original>
